<compile_context>
chip_gen: v5e
topology: v5e:2x2
jax: 0.10.0
libtpu: 0.0.40
codegen_flags: <defaults>
</compile_context>

<pallas_src>
import jax
import jax.numpy as jnp
from jax.experimental import pallas as pl
from jax.experimental.pallas import tpu as pltpu


# ---------------- budgets (sized for v7x: 64 MiB physical VMEM) ----------------
_VMEM_LIMIT_BYTES = 48 << 20     # scoped VMEM limit; safe on v7x, plenty on v5e/v6e
_FUSED_BUDGET_BYTES = 40 << 20   # in/out double-buffers + f32 temps for fused slab
_TILE_TARGET_BYTES = 4 << 20     # ~1-4 MiB blocks amortize ~0.35 us/step grid overhead


# ----------------------- fused kernel: grid = (N,) -----------------------------
def _scse_fused_kernel(x_ref, w1_ref, b1_ref, w2t_ref, b2_ref, ws_ref, bs_ref, o_ref):
    x = x_ref[0]                                                   # (C, HW) native dtype
    xf = x.astype(jnp.float32)
    hw = x.shape[1]

    # ---- cSE: global average pool + 2-layer MLP (VPU + XLU reduces, all in f32) ----
    pooled = jnp.sum(xf, axis=1, keepdims=True) * (1.0 / hw)       # (C, 1) lane reduce
    w1 = w1_ref[...].astype(jnp.float32)                           # (C, Cr)
    b1 = b1_ref[...].astype(jnp.float32)                           # (1, Cr)
    hid = jnp.maximum(jnp.sum(w1 * pooled, axis=0, keepdims=True) + b1, 0.0)   # (1, Cr)
    w2t = w2t_ref[...].astype(jnp.float32)                         # (C, Cr) == W2
    b2 = b2_ref[...].astype(jnp.float32)                           # (C, 1)
    cgate = jax.nn.sigmoid(jnp.sum(w2t * hid, axis=1, keepdims=True) + b2)     # (C, 1)

    # ---- sSE: per-pixel gate, sublane reduce over channels ----
    ws = ws_ref[...].astype(jnp.float32)                           # (C, 1)
    bs = bs_ref[0]                                                 # scalar (SMEM)
    sgate = jax.nn.sigmoid(jnp.sum(xf * ws, axis=0, keepdims=True) + bs)       # (1, HW)

    # ---- fused gating: x*cSE + x*sSE == x * (cSE + sSE) ----
    gate = cgate + sgate                                           # (C, HW) f32
    if x.dtype == jnp.float32:
        o_ref[0] = (xf * gate).astype(o_ref.dtype)
    else:
        # keep the dominant elementwise multiply in the activation dtype (bf16 VALU)
        o_ref[0] = (x * gate.astype(x.dtype)).astype(o_ref.dtype)


# --------------------- tiled fallback kernel: grid = (N, T) --------------------
def _scse_tiled_kernel(x_ref, cgate_ref, ws_ref, bs_ref, o_ref):
    x = x_ref[0]                                                   # (C, T)
    xf = x.astype(jnp.float32)

    ws = ws_ref[...].astype(jnp.float32)                           # (C, 1)
    bs = bs_ref[0]                                                 # scalar (SMEM)
    sgate = jax.nn.sigmoid(jnp.sum(xf * ws, axis=0, keepdims=True) + bs)       # (1, T)
    cgate = cgate_ref[0].astype(jnp.float32)                       # (C, 1) precomputed

    gate = cgate + sgate                                           # (C, T) f32
    if x.dtype == jnp.float32:
        o_ref[0] = (xf * gate).astype(o_ref.dtype)
    else:
        o_ref[0] = (x * gate.astype(x.dtype)).astype(o_ref.dtype)


# --------------------------------- sizing ---------------------------------------
def _fused_fits(C, HW, itemsize):
    """Whole (C, HW) slab resident: 2 in-buffers + 2 out-buffers + f32 working temps."""
    slab = C * HW * itemsize
    f32_temps = 2 * C * HW * 4                   # xf / gate intermediates
    return 4 * slab + f32_temps <= _FUSED_BUDGET_BYTES


def _pick_tile_hw(hw_padded, C, itemsize, hw_cap):
    """Largest power-of-two multiple of 128 dividing hw_padded whose (C, tile) block
    stays under the byte target (and under hw_cap, the megacore guard)."""
    t = 128
    while (hw_padded % (t * 2) == 0
           and C * (t * 2) * itemsize <= _TILE_TARGET_BYTES
           and t * 2 <= hw_cap):
        t *= 2
    return t


# --------------------------------- wrapper ---------------------------------------
def scse_pallas(x_nchw, w1, b1, w2, b2, ws, bs, *, donate_x=False, force_tiled=False):
    """x_nchw: (N, C, H, W).
       w1: (C, Cr), b1: (Cr,), w2: (Cr, C), b2: (C,), ws: (C, 1), bs: (1,)."""
    N, C, H, W = x_nchw.shape
    HW = H * W
    Cr = w1.shape[1]
    itemsize = x_nchw.dtype.itemsize

    # NCHW -> (N, C, HW): pure reshape (no HBM round-trip); HW on lanes, C on sublanes.
    x = x_nchw.reshape(N, C, HW)

    # ---------------- fused single-pass path ----------------
    if _fused_fits(C, HW, itemsize) and not force_tiled:
        out = pl.pallas_call(
            _scse_fused_kernel,
            out_shape=jax.ShapeDtypeStruct((N, C, HW), x.dtype),
            grid_spec=pltpu.PrefetchScalarGridSpec(
                num_scalar_prefetch=0,
                grid=(N,),
                in_specs=[
                    pl.BlockSpec((1, C, HW), lambda n: (n, 0, 0)),       # x slab
                    pl.BlockSpec((C, Cr), lambda n: (0, 0)),             # w1
                    pl.BlockSpec((1, Cr), lambda n: (0, 0)),             # b1
                    pl.BlockSpec((C, Cr), lambda n: (0, 0)),             # w2^T
                    pl.BlockSpec((C, 1), lambda n: (0, 0)),              # b2
                    pl.BlockSpec((C, 1), lambda n: (0, 0)),              # ws
                    pl.BlockSpec(memory_space=pltpu.MemorySpace.SMEM),   # bs scalar
                ],
                out_specs=pl.BlockSpec((1, C, HW), lambda n: (n, 0, 0)),
            ),
            compiler_params=pltpu.CompilerParams(
                dimension_semantics=("parallel",),
                vmem_limit_bytes=_VMEM_LIMIT_BYTES,
            ),
            cost_estimate=pl.CostEstimate(
                flops=6 * N * C * HW,
                transcendentals=N * (HW + C),
                bytes_accessed=2 * N * C * HW * itemsize,
            ),
            input_output_aliases=({0: 0} if donate_x else {}),
        )(x,
          w1.reshape(C, Cr), b1.reshape(1, Cr),
          w2.T.reshape(C, Cr), b2.reshape(C, 1),
          ws.reshape(C, 1), bs.reshape((1,)))
        return out.reshape(N, C, H, W)

    # ---------------- tiled fallback path ----------------
    # cSE gate in the wrapper: streaming f32 reduce directly on x's dtype stream
    # (dtype= arg prevents XLA from materializing an f32 copy of x in HBM).
    pooled = jnp.mean(x, axis=2, dtype=jnp.float32)                           # (N, C)
    hid = jnp.maximum(pooled @ w1.astype(jnp.float32) + b1.astype(jnp.float32), 0.0)
    cgate = jax.nn.sigmoid(hid @ w2.astype(jnp.float32) + b2.astype(jnp.float32))
    cgate = cgate[..., None]                                                  # (N, C, 1)

    # Harden odd spatial sizes: pad HW to a multiple of 128 (lane-dense stores);
    # padded x is 0 so padded outputs are 0 and get sliced off.
    hw_pad = HW
    x_k = x
    if HW % 128 != 0:
        hw_pad = ((HW + 127) // 128) * 128
        x_k = jnp.pad(x, ((0, 0), (0, 0), (0, hw_pad - HW)))

    # Megacore guard (v7x, 2 TCs): keep >= 2 parallel grid steps when N == 1.
    hw_cap = max(128, hw_pad // 2) if N == 1 else hw_pad
    tile_hw = _pick_tile_hw(hw_pad, C, itemsize, hw_cap)
    grid = (N, hw_pad // tile_hw)

    out = pl.pallas_call(
        _scse_tiled_kernel,
        out_shape=jax.ShapeDtypeStruct((N, C, hw_pad), x.dtype),
        grid_spec=pltpu.PrefetchScalarGridSpec(
            num_scalar_prefetch=0,
            grid=grid,
            in_specs=[
                pl.BlockSpec((1, C, tile_hw), lambda n, t: (n, 0, t)),   # x tile
                pl.BlockSpec((1, C, 1), lambda n, t: (n, 0, 0)),         # cgate
                pl.BlockSpec((C, 1), lambda n, t: (0, 0)),               # ws
                pl.BlockSpec(memory_space=pltpu.MemorySpace.SMEM),       # bs scalar
            ],
            out_specs=pl.BlockSpec((1, C, tile_hw), lambda n, t: (n, 0, t)),
        ),
        compiler_params=pltpu.CompilerParams(
            dimension_semantics=("parallel", "parallel"),
            vmem_limit_bytes=_VMEM_LIMIT_BYTES,
        ),
        cost_estimate=pl.CostEstimate(
            flops=4 * N * C * hw_pad,
            transcendentals=N * hw_pad,
            bytes_accessed=2 * N * C * hw_pad * itemsize,
        ),
        input_output_aliases=({0: 0} if (donate_x and hw_pad == HW) else {}),
    )(x_k, cgate, ws.reshape(C, 1), bs.reshape((1,)))

    if hw_pad != HW:
        out = out[:, :, :HW]
    return out.reshape(N, C, H, W)


# --------------------------------- reference --------------------------------------
def _reference(x_nchw, w1, b1, w2, b2, ws, bs):
    # Pure-JAX reference of the PyTorch forward (for sanity checking).
    xf = x_nchw.astype(jnp.float32)
    pooled = jnp.mean(xf, axis=(2, 3))                                  # (N, C)
    h = jnp.maximum(pooled @ w1 + b1, 0.0)                              # (N, Cr)
    cgate = jax.nn.sigmoid(h @ w2 + b2)[:, :, None, None]               # (N, C, 1, 1)
    sgate = jax.nn.sigmoid(
        jnp.einsum("nchw,c->nhw", xf, ws[:, 0]) + bs[0]
    )[:, None]                                                          # (N, 1, H, W)
    return (xf * cgate + xf * sgate).astype(x_nchw.dtype)


if __name__ == "__main__":
    # Shapes consistent with the module: in_channels=32, reduction=16 -> hidden=2.
    N, C, H, W = 2, 32, 64, 64
    reduction = 16
    Cr = C // reduction

    key = jax.random.PRNGKey(0)
    kx, k1, kb1, k2, kb2, ks, kbs, kx2 = jax.random.split(key, 8)

    x = jax.random.normal(kx, (N, C, H, W), dtype=jnp.float32)

    # Deterministic synthetic parameters (1x1 conv weights == dense matrices).
    w1 = jax.random.normal(k1, (C, Cr), dtype=jnp.float32) * 0.1
    b1 = jax.random.normal(kb1, (Cr,), dtype=jnp.float32) * 0.1
    w2 = jax.random.normal(k2, (Cr, C), dtype=jnp.float32) * 0.1
    b2 = jax.random.normal(kb2, (C,), dtype=jnp.float32) * 0.1
    ws = jax.random.normal(ks, (C, 1), dtype=jnp.float32) * 0.1
    bs = jax.random.normal(kbs, (1,), dtype=jnp.float32) * 0.1

    ref = _reference(x, w1, b1, w2, b2, ws, bs)

    # Fused single-pass path (avg-pool + cSE MLP inside the kernel).
    out_fused = jax.block_until_ready(scse_pallas(x, w1, b1, w2, b2, ws, bs))
    assert out_fused.shape == (N, C, H, W)
    assert jnp.allclose(out_fused, ref, atol=1e-4, rtol=1e-4), "fused path mismatch"

    # Tiled fallback path (wrapper pool + per-tile gating).
    out_tiled = jax.block_until_ready(
        scse_pallas(x, w1, b1, w2, b2, ws, bs, force_tiled=True))
    assert jnp.allclose(out_tiled, ref, atol=1e-4, rtol=1e-4), "tiled path mismatch"

    # Odd spatial size exercises the HW%128 padding of the fallback path.
    x_odd = jax.random.normal(kx2, (1, C, 50, 50), dtype=jnp.float32)
    ref_odd = _reference(x_odd, w1, b1, w2, b2, ws, bs)
    out_odd = jax.block_until_ready(
        scse_pallas(x_odd, w1, b1, w2, b2, ws, bs, force_tiled=True))
    assert jnp.allclose(out_odd, ref_odd, atol=1e-4, rtol=1e-4), "padded path mismatch"

    print("KERNEL_OK")
</pallas_src>

<mosaic_0001>
module attributes {stable_mosaic.version = 11 : i64} {
  func.func @_scse_fused_kernel(%arg0: i32, %arg1: memref<1x32x4096xf32, #tpu.memory_space<vmem>>, %arg2: memref<32x2xf32, #tpu.memory_space<vmem>>, %arg3: memref<1x2xf32, #tpu.memory_space<vmem>>, %arg4: memref<32x2xf32, #tpu.memory_space<vmem>>, %arg5: memref<32x1xf32, #tpu.memory_space<vmem>>, %arg6: memref<32x1xf32, #tpu.memory_space<vmem>>, %arg7: memref<1xf32, #tpu.memory_space<smem>>, %arg8: memref<1x32x4096xf32, #tpu.memory_space<vmem>>) attributes {dimension_semantics = [#tpu.dimension_semantics<parallel>], iteration_bounds = array<i64: 2>, scalar_prefetch = 0 : i64, scratch_operands = 0 : i64, tpu.core_type = #tpu.core_type<tc>, window_params = [{transform_indices = @transform_0, window_bounds = array<i64: 1, 32, 4096>}, {pipeline_mode = #tpu.pipeline_mode<synchronous>, transform_indices = @transform_1, window_bounds = array<i64: 32, 2>}, {pipeline_mode = #tpu.pipeline_mode<synchronous>, transform_indices = @transform_2, window_bounds = array<i64: 1, 2>}, {pipeline_mode = #tpu.pipeline_mode<synchronous>, transform_indices = @transform_3, window_bounds = array<i64: 32, 2>}, {pipeline_mode = #tpu.pipeline_mode<synchronous>, transform_indices = @transform_4, window_bounds = array<i64: 32, 1>}, {pipeline_mode = #tpu.pipeline_mode<synchronous>, transform_indices = @transform_5, window_bounds = array<i64: 32, 1>}, {transform_indices = @transform_6, window_bounds = array<i64: 1>}, {transform_indices = @transform_7, window_bounds = array<i64: 1, 32, 4096>}]} {
    %c0 = arith.constant 0 : index
    %c0_0 = arith.constant 0 : index
    %c0_1 = arith.constant 0 : index
    %0 = vector.load %arg1[%c0, %c0_0, %c0_1] : memref<1x32x4096xf32, #tpu.memory_space<vmem>>, vector<1x32x4096xf32>
    %1 = vector.shape_cast %0 : vector<1x32x4096xf32> to vector<32x4096xf32>
    %cst = arith.constant dense<0.000000e+00> : vector<32xf32>
    %2 = vector.multi_reduction <add>, %1, %cst [1] : vector<32x4096xf32> to vector<32xf32>
    %3 = vector.shape_cast %2 : vector<32xf32> to vector<32x1xf32>
    %cst_2 = arith.constant 2.44140625E-4 : f32
    %4 = vector.broadcast %cst_2 : f32 to vector<32x1xf32>
    %5 = arith.mulf %3, %4 : vector<32x1xf32>
    %c0_3 = arith.constant 0 : index
    %c0_4 = arith.constant 0 : index
    %6 = vector.load %arg2[%c0_3, %c0_4] : memref<32x2xf32, #tpu.memory_space<vmem>>, vector<32x2xf32>
    %c0_5 = arith.constant 0 : index
    %c0_6 = arith.constant 0 : index
    %7 = vector.load %arg3[%c0_5, %c0_6] : memref<1x2xf32, #tpu.memory_space<vmem>>, vector<1x2xf32>
    %8 = vector.broadcast %5 : vector<32x1xf32> to vector<32x2xf32>
    %9 = arith.mulf %6, %8 : vector<32x2xf32>
    %cst_7 = arith.constant dense<0.000000e+00> : vector<2xf32>
    %10 = vector.multi_reduction <add>, %9, %cst_7 [0] : vector<32x2xf32> to vector<2xf32>
    %11 = vector.shape_cast %10 : vector<2xf32> to vector<1x2xf32>
    %12 = arith.addf %11, %7 : vector<1x2xf32>
    %cst_8 = arith.constant 0.000000e+00 : f32
    %13 = vector.broadcast %cst_8 : f32 to vector<1x2xf32>
    %14 = arith.maximumf %12, %13 : vector<1x2xf32>
    %c0_9 = arith.constant 0 : index
    %c0_10 = arith.constant 0 : index
    %15 = vector.load %arg4[%c0_9, %c0_10] : memref<32x2xf32, #tpu.memory_space<vmem>>, vector<32x2xf32>
    %c0_11 = arith.constant 0 : index
    %c0_12 = arith.constant 0 : index
    %16 = vector.load %arg5[%c0_11, %c0_12] : memref<32x1xf32, #tpu.memory_space<vmem>>, vector<32x1xf32>
    %17 = vector.broadcast %14 : vector<1x2xf32> to vector<32x2xf32>
    %18 = arith.mulf %15, %17 : vector<32x2xf32>
    %cst_13 = arith.constant dense<0.000000e+00> : vector<32xf32>
    %19 = vector.multi_reduction <add>, %18, %cst_13 [1] : vector<32x2xf32> to vector<32xf32>
    %20 = vector.shape_cast %19 : vector<32xf32> to vector<32x1xf32>
    %21 = arith.addf %20, %16 : vector<32x1xf32>
    %22 = arith.negf %21 : vector<32x1xf32>
    %23 = math.exp %22 : vector<32x1xf32>
    %cst_14 = arith.constant 1.000000e+00 : f32
    %24 = vector.broadcast %cst_14 : f32 to vector<32x1xf32>
    %25 = arith.addf %24, %23 : vector<32x1xf32>
    %26 = arith.divf %24, %25 : vector<32x1xf32>
    %c0_15 = arith.constant 0 : index
    %c0_16 = arith.constant 0 : index
    %27 = vector.load %arg6[%c0_15, %c0_16] : memref<32x1xf32, #tpu.memory_space<vmem>>, vector<32x1xf32>
    %c0_17 = arith.constant 0 : index
    %28 = memref.load %arg7[%c0_17] : memref<1xf32, #tpu.memory_space<smem>>
    %29 = vector.broadcast %27 : vector<32x1xf32> to vector<32x4096xf32>
    %30 = arith.mulf %1, %29 : vector<32x4096xf32>
    %cst_18 = arith.constant dense<0.000000e+00> : vector<4096xf32>
    %31 = vector.multi_reduction <add>, %30, %cst_18 [0] : vector<32x4096xf32> to vector<4096xf32>
    %32 = vector.shape_cast %31 : vector<4096xf32> to vector<1x4096xf32>
    %33 = vector.broadcast %28 : f32 to vector<1x4096xf32>
    %34 = arith.addf %32, %33 : vector<1x4096xf32>
    %35 = arith.negf %34 : vector<1x4096xf32>
    %36 = math.exp %35 : vector<1x4096xf32>
    %cst_19 = arith.constant 1.000000e+00 : f32
    %37 = vector.broadcast %cst_19 : f32 to vector<1x4096xf32>
    %38 = arith.addf %37, %36 : vector<1x4096xf32>
    %39 = arith.divf %37, %38 : vector<1x4096xf32>
    %40 = vector.broadcast %26 : vector<32x1xf32> to vector<32x4096xf32>
    %41 = vector.broadcast %39 : vector<1x4096xf32> to vector<32x4096xf32>
    %42 = arith.addf %40, %41 : vector<32x4096xf32>
    %43 = arith.mulf %1, %42 : vector<32x4096xf32>
    %c0_20 = arith.constant 0 : index
    %c0_21 = arith.constant 0 : index
    %c0_22 = arith.constant 0 : index
    %44 = vector.load %arg8[%c0_20, %c0_21, %c0_22] : memref<1x32x4096xf32, #tpu.memory_space<vmem>>, vector<1x32x4096xf32>
    %45 = vector.shape_cast %44 : vector<1x32x4096xf32> to vector<32x4096xf32>
    %46 = vector.shape_cast %43 : vector<32x4096xf32> to vector<1x32x4096xf32>
    tpu.vector_store %arg8[%c0_20, %c0_21, %c0_22], %46 {strides = array<i32>} : memref<1x32x4096xf32, #tpu.memory_space<vmem>>, vector<1x32x4096xf32>,
    return
  }
  func.func @transform_0(%arg0: i32) -> (i32, i32, i32) {
    %c0_i32 = arith.constant 0 : i32
    %c0_i32_0 = arith.constant 0 : i32
    %c0_i32_1 = arith.constant 0 : i32
    return %arg0, %c0_i32, %c0_i32_0 : i32, i32, i32
  }
  func.func @transform_1(%arg0: i32) -> (i32, i32) {
    %c0_i32 = arith.constant 0 : i32
    %c0_i32_0 = arith.constant 0 : i32
    %c0_i32_1 = arith.constant 0 : i32
    return %c0_i32, %c0_i32_0 : i32, i32
  }
  func.func @transform_2(%arg0: i32) -> (i32, i32) {
    %c0_i32 = arith.constant 0 : i32
    %c0_i32_0 = arith.constant 0 : i32
    %c0_i32_1 = arith.constant 0 : i32
    return %c0_i32, %c0_i32_0 : i32, i32
  }
  func.func @transform_3(%arg0: i32) -> (i32, i32) {
    %c0_i32 = arith.constant 0 : i32
    %c0_i32_0 = arith.constant 0 : i32
    %c0_i32_1 = arith.constant 0 : i32
    return %c0_i32, %c0_i32_0 : i32, i32
  }
  func.func @transform_4(%arg0: i32) -> (i32, i32) {
    %c0_i32 = arith.constant 0 : i32
    %c0_i32_0 = arith.constant 0 : i32
    %c0_i32_1 = arith.constant 0 : i32
    return %c0_i32, %c0_i32_0 : i32, i32
  }
  func.func @transform_5(%arg0: i32) -> (i32, i32) {
    %c0_i32 = arith.constant 0 : i32
    %c0_i32_0 = arith.constant 0 : i32
    %c0_i32_1 = arith.constant 0 : i32
    return %c0_i32, %c0_i32_0 : i32, i32
  }
  func.func @transform_6(%arg0: i32) -> i32 {
    %c0_i32 = arith.constant 0 : i32
    %c0_i32_0 = arith.constant 0 : i32
    return %c0_i32 : i32
  }
  func.func @transform_7(%arg0: i32) -> (i32, i32, i32) {
    %c0_i32 = arith.constant 0 : i32
    %c0_i32_0 = arith.constant 0 : i32
    %c0_i32_1 = arith.constant 0 : i32
    return %arg0, %c0_i32, %c0_i32_0 : i32, i32, i32
  }
}

</mosaic_0001>

<llo_original>
// kernel: tpu_custom_call.1
$region0: #{tpu_custom_call.1}
  #allocation0 [shape = 'u32[]', space=smem, size = 0x4, offset = 0x4, fixed_abs, tag = 'smem constant byte address 0x4 - core index']
  #allocation1 [shape = 'u32[72,128]{1,0:T(1,128)}', space=vmem, size = 0x9000, scoped, tag = 'internal scratch']
  #allocation2 [shape = 'f32[1]{0:T(128)S(6)}', space=smem, size = 0x200, scoped, tag = 'scoped memory for tpu_custom_call.1']
  %s0 = inlined_call_operand.hbm [shape: f32[2,32,4096], index: 0, kind: input, shape index: {}]
  %s1 = inlined_call_operand.vmem [shape: f32[32,2], index: 1, kind: input, shape index: {}]
  %s2 = inlined_call_operand.vmem [shape: f32[1,2], index: 2, kind: input, shape index: {}]
  %s3 = inlined_call_operand.vmem [shape: f32[32,2], index: 3, kind: input, shape index: {}]
  %s4 = inlined_call_operand.vmem [shape: f32[32,1], index: 4, kind: input, shape index: {}]
  %s5 = inlined_call_operand.vmem [shape: f32[32,1], index: 5, kind: input, shape index: {}]
  %s6 = inlined_call_operand.<no memory space> [shape: f32[1], index: 6, kind: input, shape index: {}]
  %s7 = inlined_call_operand.hbm [shape: f32[2,32,4096], index: 7, kind: output, shape index: {}]
  %s8 = sld [smem:[#allocation0]]
  $region65: #{tpu_custom_call.1} parent=0
    _
  %s10 = ssub.s32 1, %s8
  %s11 = scalar_select 0, %s10, %s8
  %12 = sst [smem:[#allocation2]] %s6
  $region1: #{tpu_custom_call.1} parent=0
    #allocation3 [shape = 'u8[1048576]{0}', space=vmem, size = 0x100000, scoped, tag = 'input window, operand 0']
    #allocation4 [shape = 's32[2]{0}', space=sflag, size = 0x8, scoped, tag = 'scoped memory for tpu_custom_call.1']
    #allocation5 [shape = 's32[2]{0}', space=sflag, size = 0x8, scoped, tag = 'scoped memory for tpu_custom_call.1']
    #allocation6 [shape = 'u8[1048576]{0}', space=vmem, size = 0x100000, scoped, tag = 'output window, operand 0']
    %13 = vsyncpa [#allocation4], 0
    %s14 = scalar_lea.sflag [#allocation4], 1
    %15 = vsyncpa %s14, 0
    %16 = vsyncpa [#allocation5], 0
    %s17 = scalar_lea.sflag [#allocation5], 1
    %18 = vsyncpa %s17, 0
    loop: start=0, step=1, limit=4
    $region2: #{tpu_custom_call.1} parent=1 // loop_pre_header
      _
    $region3: #{tpu_custom_call.1} parent=1 // loop_header
      %s20 = sphi 0, %s24
      %p21 = scmp.ge.s32.totalorder %s20, 4
      %s30 = sphi 0, %s32
      %s33 = sphi 0, %s30
      %s34 = sphi 0, %s33
      %s50 = sphi 0, %s34
      %s54 = sphi 0, %s54
      %s56 = sphi 0, %s54
      %s57 = sphi 0, %s56
      %s71 = sphi 0, %s57
      %s75 = sphi 0, %s75
      %s77 = sphi 0, %s75
      %s78 = sphi 0, %s77
      %s92 = sphi 0, %s78
      %s96 = sphi 0, %s96
      %s98 = sphi 0, %s96
      %s99 = sphi 0, %s98
      %s113 = sphi 0, %s99
      %s117 = sphi 0, %s117
      %s119 = sphi 0, %s117
      %s120 = sphi 0, %s119
      %s134 = sphi 0, %s120
      %s138 = sphi 0, %s138
      %s140 = sphi 0, %s138
      %s141 = sphi 0, %s140
      %s155 = sphi 0, %s141
      %s159 = sphi 0, %s159
      %s161 = sphi 0, %s159
      %s162 = sphi 0, %s161
      %s176 = sphi 0, %s162
      %s182 = sphi 0, %s184
      %s185 = sphi 0, %s182
      %s186 = sphi 0, %s185
      %s202 = sphi 0, %s186
    $region4: #{tpu_custom_call.1} parent=1 // loop_header_branch
      %23 = sbr.rel (%p21) target = $region8
    $region5: #{tpu_custom_call.1} parent=1 // loop_body
      %s25 = ssub.s32 %s20, 1
      %s26 = ssub.s32 %s20, 2
      %s27 = sadd.s32 %s20, 1
      %s28 = ssub.s32 %s20, %s27
      %p29 = scmp.eq.s32.totalorder %s28, 0
      %s31 = sadd.s32 %s30, 1
      %s32 = scalar_select %p29, %s30, %s31
      %p35 = pneg %p29
      %p36 = scmp.eq.s32.totalorder %s20, 1
      %p37 = por %p35, %p36
      %p38 = scmp.ne.s32.totalorder %s30, %s33
      %p39 = scmp.eq.s32.totalorder %s20, 0
      %p40 = por %p38, %p39
      %p41 = scmp.ne.s32.totalorder %s30, %s33
      %p42 = scmp.eq.s32.totalorder %s25, 1
      %p43 = por %p41, %p42
      %p44 = scmp.ne.s32.totalorder %s33, %s34
      %p45 = scmp.eq.s32.totalorder %s25, 0
      %p46 = por %p44, %p45
      %p47 = scmp.ne.s32.totalorder %s33, %s34
      %p48 = scmp.eq.s32.totalorder %s26, 1
      %p49 = por %p47, %p48
      %p51 = scmp.ne.s32.totalorder %s34, %s50
      %p52 = scmp.eq.s32.totalorder %s26, 0
      %p53 = por %p51, %p52
      %s55 = sadd.s32 %s54, 1
      %p58 = scmp.eq.s32.totalorder %s20, 1
      %p59 = scmp.ne.s32.totalorder %s54, %s56
      %p60 = scmp.eq.s32.totalorder %s20, 0
      %p61 = por %p59, %p60
      %p62 = scmp.ne.s32.totalorder %s54, %s56
      %p63 = scmp.eq.s32.totalorder %s25, 1
      %p64 = por %p62, %p63
      %p65 = scmp.ne.s32.totalorder %s56, %s57
      %p66 = scmp.eq.s32.totalorder %s25, 0
      %p67 = por %p65, %p66
      %p68 = scmp.ne.s32.totalorder %s56, %s57
      %p69 = scmp.eq.s32.totalorder %s26, 1
      %p70 = por %p68, %p69
      %p72 = scmp.ne.s32.totalorder %s57, %s71
      %p73 = scmp.eq.s32.totalorder %s26, 0
      %p74 = por %p72, %p73
      %s76 = sadd.s32 %s75, 1
      %p79 = scmp.eq.s32.totalorder %s20, 1
      %p80 = scmp.ne.s32.totalorder %s75, %s77
      %p81 = scmp.eq.s32.totalorder %s20, 0
      %p82 = por %p80, %p81
      %p83 = scmp.ne.s32.totalorder %s75, %s77
      %p84 = scmp.eq.s32.totalorder %s25, 1
      %p85 = por %p83, %p84
      %p86 = scmp.ne.s32.totalorder %s77, %s78
      %p87 = scmp.eq.s32.totalorder %s25, 0
      %p88 = por %p86, %p87
      %p89 = scmp.ne.s32.totalorder %s77, %s78
      %p90 = scmp.eq.s32.totalorder %s26, 1
      %p91 = por %p89, %p90
      %p93 = scmp.ne.s32.totalorder %s78, %s92
      %p94 = scmp.eq.s32.totalorder %s26, 0
      %p95 = por %p93, %p94
      %s97 = sadd.s32 %s96, 1
      %p100 = scmp.eq.s32.totalorder %s20, 1
      %p101 = scmp.ne.s32.totalorder %s96, %s98
      %p102 = scmp.eq.s32.totalorder %s20, 0
      %p103 = por %p101, %p102
      %p104 = scmp.ne.s32.totalorder %s96, %s98
      %p105 = scmp.eq.s32.totalorder %s25, 1
      %p106 = por %p104, %p105
      %p107 = scmp.ne.s32.totalorder %s98, %s99
      %p108 = scmp.eq.s32.totalorder %s25, 0
      %p109 = por %p107, %p108
      %p110 = scmp.ne.s32.totalorder %s98, %s99
      %p111 = scmp.eq.s32.totalorder %s26, 1
      %p112 = por %p110, %p111
      %p114 = scmp.ne.s32.totalorder %s99, %s113
      %p115 = scmp.eq.s32.totalorder %s26, 0
      %p116 = por %p114, %p115
      %s118 = sadd.s32 %s117, 1
      %p121 = scmp.eq.s32.totalorder %s20, 1
      %p122 = scmp.ne.s32.totalorder %s117, %s119
      %p123 = scmp.eq.s32.totalorder %s20, 0
      %p124 = por %p122, %p123
      %p125 = scmp.ne.s32.totalorder %s117, %s119
      %p126 = scmp.eq.s32.totalorder %s25, 1
      %p127 = por %p125, %p126
      %p128 = scmp.ne.s32.totalorder %s119, %s120
      %p129 = scmp.eq.s32.totalorder %s25, 0
      %p130 = por %p128, %p129
      %p131 = scmp.ne.s32.totalorder %s119, %s120
      %p132 = scmp.eq.s32.totalorder %s26, 1
      %p133 = por %p131, %p132
      %p135 = scmp.ne.s32.totalorder %s120, %s134
      %p136 = scmp.eq.s32.totalorder %s26, 0
      %p137 = por %p135, %p136
      %s139 = sadd.s32 %s138, 1
      %p142 = scmp.eq.s32.totalorder %s20, 1
      %p143 = scmp.ne.s32.totalorder %s138, %s140
      %p144 = scmp.eq.s32.totalorder %s20, 0
      %p145 = por %p143, %p144
      %p146 = scmp.ne.s32.totalorder %s138, %s140
      %p147 = scmp.eq.s32.totalorder %s25, 1
      %p148 = por %p146, %p147
      %p149 = scmp.ne.s32.totalorder %s140, %s141
      %p150 = scmp.eq.s32.totalorder %s25, 0
      %p151 = por %p149, %p150
      %p152 = scmp.ne.s32.totalorder %s140, %s141
      %p153 = scmp.eq.s32.totalorder %s26, 1
      %p154 = por %p152, %p153
      %p156 = scmp.ne.s32.totalorder %s141, %s155
      %p157 = scmp.eq.s32.totalorder %s26, 0
      %p158 = por %p156, %p157
      %s160 = sadd.s32 %s159, 1
      %p163 = scmp.eq.s32.totalorder %s20, 1
      %p164 = scmp.ne.s32.totalorder %s159, %s161
      %p165 = scmp.eq.s32.totalorder %s20, 0
      %p166 = por %p164, %p165
      %p167 = scmp.ne.s32.totalorder %s159, %s161
      %p168 = scmp.eq.s32.totalorder %s25, 1
      %p169 = por %p167, %p168
      %p170 = scmp.ne.s32.totalorder %s161, %s162
      %p171 = scmp.eq.s32.totalorder %s25, 0
      %p172 = por %p170, %p171
      %p173 = scmp.ne.s32.totalorder %s161, %s162
      %p174 = scmp.eq.s32.totalorder %s26, 1
      %p175 = por %p173, %p174
      %p177 = scmp.ne.s32.totalorder %s162, %s176
      %p178 = scmp.eq.s32.totalorder %s26, 0
      %p179 = por %p177, %p178
      %s180 = ssub.s32 %s20, %s27
      %p181 = scmp.eq.s32.totalorder %s180, 0
      %s183 = sadd.s32 %s182, 1
      %s184 = scalar_select %p181, %s182, %s183
      %p187 = pneg %p181
      %p188 = scmp.eq.s32.totalorder %s20, 1
      %p189 = por %p187, %p188
      %p190 = scmp.ne.s32.totalorder %s182, %s185
      %p191 = scmp.eq.s32.totalorder %s20, 0
      %p192 = por %p190, %p191
      %p193 = scmp.ne.s32.totalorder %s182, %s185
      %p194 = scmp.eq.s32.totalorder %s25, 1
      %p195 = por %p193, %p194
      %p196 = scmp.ne.s32.totalorder %s185, %s186
      %p197 = scmp.eq.s32.totalorder %s25, 0
      %p198 = por %p196, %p197
      %p199 = scmp.ne.s32.totalorder %s185, %s186
      %p200 = scmp.eq.s32.totalorder %s26, 1
      %p201 = por %p199, %p200
      %p203 = scmp.ne.s32.totalorder %s186, %s202
      %p204 = scmp.eq.s32.totalorder %s26, 0
      %p205 = por %p203, %p204
      %p206 = scmp.le.s32.totalorder 1, %s20
      %p207 = scmp.lt.s32.totalorder %s20, 3
      %p208 = pnand %p206, %p207
      %p209 = pneg %p208
      // Predicated region
      $region9: #{tpu_custom_call.1} parent=5 // pred_check
        _
      $region10: #{tpu_custom_call.1} parent=5 // pred_check_branch
        %211 = sbr.rel (%p208) target = $region12
      $region11: #{tpu_custom_call.1} parent=5 // pred_region
        %s212 = ssub.s32 %s20, 1
        // Predicated region
        $region13: #{tpu_custom_call.1} parent=11 // pred_check
          %p213 = pneg %p67
        $region14: #{tpu_custom_call.1} parent=11 // pred_check_branch
          %215 = sbr.rel (%p213) target = $region16
        $region15: #{tpu_custom_call.1} parent=11 // pred_region
          _
        $region16: #{tpu_custom_call.1} parent=11 // pred_fallthru
          _
        // Predicated region
        $region17: #{tpu_custom_call.1} parent=11 // pred_check
          %p216 = pneg %p88
        $region18: #{tpu_custom_call.1} parent=11 // pred_check_branch
          %218 = sbr.rel (%p216) target = $region20
        $region19: #{tpu_custom_call.1} parent=11 // pred_region
          _
        $region20: #{tpu_custom_call.1} parent=11 // pred_fallthru
          _
        // Predicated region
        $region21: #{tpu_custom_call.1} parent=11 // pred_check
          %p219 = pneg %p109
        $region22: #{tpu_custom_call.1} parent=11 // pred_check_branch
          %221 = sbr.rel (%p219) target = $region24
        $region23: #{tpu_custom_call.1} parent=11 // pred_region
          _
        $region24: #{tpu_custom_call.1} parent=11 // pred_fallthru
          _
        // Predicated region
        $region25: #{tpu_custom_call.1} parent=11 // pred_check
          %p222 = pneg %p130
        $region26: #{tpu_custom_call.1} parent=11 // pred_check_branch
          %224 = sbr.rel (%p222) target = $region28
        $region27: #{tpu_custom_call.1} parent=11 // pred_region
          _
        $region28: #{tpu_custom_call.1} parent=11 // pred_fallthru
          _
        // Predicated region
        $region29: #{tpu_custom_call.1} parent=11 // pred_check
          %p225 = pneg %p151
        $region30: #{tpu_custom_call.1} parent=11 // pred_check_branch
          %227 = sbr.rel (%p225) target = $region32
        $region31: #{tpu_custom_call.1} parent=11 // pred_region
          _
        $region32: #{tpu_custom_call.1} parent=11 // pred_fallthru
          _
        // Predicated region
        $region33: #{tpu_custom_call.1} parent=11 // pred_check
          %p228 = pneg %p172
        $region34: #{tpu_custom_call.1} parent=11 // pred_check_branch
          %230 = sbr.rel (%p228) target = $region36
        $region35: #{tpu_custom_call.1} parent=11 // pred_region
          _
        $region36: #{tpu_custom_call.1} parent=11 // pred_fallthru
          _
      $region12: #{tpu_custom_call.1} parent=5 // pred_fallthru
        _
      %p231 = scmp.lt.s32.totalorder %s20, 2
      // Predicated region
      $region37: #{tpu_custom_call.1} parent=5 // pred_check
        %p232 = pneg %p231
      $region38: #{tpu_custom_call.1} parent=5 // pred_check_branch
        %234 = sbr.rel (%p232) target = $region40
      $region39: #{tpu_custom_call.1} parent=5 // pred_region
        // Predicated region
        $region41: #{tpu_custom_call.1} parent=39 // pred_check
          %p235 = pneg %p40
        $region42: #{tpu_custom_call.1} parent=39 // pred_check_branch
          %237 = sbr.rel (%p235) target = $region44
        $region43: #{tpu_custom_call.1} parent=39 // pred_region
          %s238 = sand.u32 %s30, 1
          %s239 = scalar_lea.sflag [#allocation4], %s238
          %s240 = sand.u32 %s30, 1
          %s241 = smul.addr %s240, 1024
          %s242 = scalar_lea.vmem [#allocation3], %s241
          %244 = vsyncadd %s239, 0
          %s245 = smul.addr %s20, 128
          %s246 = smul.addr %s245, 8
          %s247 = scalar_lea.hbm %s0, %s246
          %s248 = sshll.u32 %s247, 4
          %s249 = int_to_ptr.hbm [resolvable:$true] %s248
          %s250 = sshll.u32 %s242, 4
          %s251 = int_to_ptr.vmem [resolvable:$true] %s250
          %256 = dma.hbm_to_vmem [thread:$0]  %s249, 16384, %s251, %s239, 4096, 4096, 256
        $region44: #{tpu_custom_call.1} parent=39 // pred_fallthru
          _
      $region40: #{tpu_custom_call.1} parent=5 // pred_fallthru
        _
      %p257 = scmp.le.s32.totalorder 1, %s20
      %p258 = scmp.lt.s32.totalorder %s20, 3
      %p259 = pnand %p257, %p258
      %p260 = pneg %p259
      // Predicated region
      $region45: #{tpu_custom_call.1} parent=5 // pred_check
        _
      $region46: #{tpu_custom_call.1} parent=5 // pred_check_branch
        %262 = sbr.rel (%p259) target = $region48
      $region47: #{tpu_custom_call.1} parent=5 // pred_region
        %s263 = ssub.s32 %s20, 1
        %s264 = sand.u32 %s33, 1
        %s265 = scalar_lea.sflag [#allocation4], %s264
        %s266 = sand.u32 %s33, 1
        %s267 = smul.addr %s266, 1024
        %s268 = scalar_lea.vmem [#allocation3], %s267
        // Predicated region
        $region49: #{tpu_custom_call.1} parent=47 // pred_check
          %p269 = pneg %p46
        $region50: #{tpu_custom_call.1} parent=47 // pred_check_branch
          %271 = sbr.rel (%p269) target = $region52
        $region51: #{tpu_custom_call.1} parent=47 // pred_region
          %273 = dma.done %s265, 16384
        $region52: #{tpu_custom_call.1} parent=47 // pred_fallthru
          _
        %s274 = sand.u32 %s33, 1
        %s275 = scalar_lea.sflag [#allocation4], %s274
        %s276 = sand.u32 %s33, 1
        %s277 = smul.addr %s276, 1024
        %s278 = scalar_lea.vmem [#allocation3], %s277
        %p279 = pneg %p46
        %p280 = pneg %p43
        %p281 = pneg %p67
        %p282 = pneg %p64
        %p283 = pneg %p88
        %p284 = pneg %p85
        %p285 = pneg %p109
        %p286 = pneg %p106
        %p287 = pneg %p130
        %p288 = pneg %p127
        %p289 = pneg %p151
        %p290 = pneg %p148
        %p291 = pneg %p172
        %p292 = pneg %p169
        %p293 = pneg %p198
        %p294 = pneg %p195
        %s295 = sand.u32 %s185, 1
        %s296 = scalar_lea.sflag [#allocation5], %s295
        %s297 = sand.u32 %s185, 1
        %s298 = smul.addr %s297, 1024
        %s299 = scalar_lea.vmem [#allocation6], %s298
        %v300 = vld [vmem:[%s268] sm:$0xff]
        %v301 = vld [vmem:[%s268 + $0x8] sm:$0xff]
        %v302 = vld [vmem:[%s268 + $0x10] sm:$0xff]
        %v303 = vld [vmem:[%s268 + $0x18] sm:$0xff]
        %v304 = vld [vmem:[%s268 + $0x20] sm:$0xff]
        %v305 = vld [vmem:[%s268 + $0x28] sm:$0xff]
        %v306 = vld [vmem:[%s268 + $0x30] sm:$0xff]
        %v307 = vld [vmem:[%s268 + $0x38] sm:$0xff]
        %v308 = vld [vmem:[%s268 + $0x40] sm:$0xff]
        %v309 = vld [vmem:[%s268 + $0x48] sm:$0xff]
        %v310 = vld [vmem:[%s268 + $0x50] sm:$0xff]
        %v311 = vld [vmem:[%s268 + $0x58] sm:$0xff]
        %v312 = vld [vmem:[%s268 + $0x60] sm:$0xff]
        %v313 = vld [vmem:[%s268 + $0x68] sm:$0xff]
        %v314 = vld [vmem:[%s268 + $0x70] sm:$0xff]
        %v315 = vld [vmem:[%s268 + $0x78] sm:$0xff]
        %v316 = vld [vmem:[%s268 + $0x80] sm:$0xff]
        %v317 = vld [vmem:[%s268 + $0x88] sm:$0xff]
        %v318 = vld [vmem:[%s268 + $0x90] sm:$0xff]
        %v319 = vld [vmem:[%s268 + $0x98] sm:$0xff]
        %v320 = vld [vmem:[%s268 + $0xa0] sm:$0xff]
        %v321 = vld [vmem:[%s268 + $0xa8] sm:$0xff]
        %v322 = vld [vmem:[%s268 + $0xb0] sm:$0xff]
        %v323 = vld [vmem:[%s268 + $0xb8] sm:$0xff]
        %v324 = vld [vmem:[%s268 + $0xc0] sm:$0xff]
        %v325 = vld [vmem:[%s268 + $0xc8] sm:$0xff]
        %v326 = vld [vmem:[%s268 + $0xd0] sm:$0xff]
        %v327 = vld [vmem:[%s268 + $0xd8] sm:$0xff]
        %v328 = vld [vmem:[%s268 + $0xe0] sm:$0xff]
        %v329 = vld [vmem:[%s268 + $0xe8] sm:$0xff]
        %v330 = vld [vmem:[%s268 + $0xf0] sm:$0xff]
        %v331 = vld [vmem:[%s268 + $0xf8] sm:$0xff]
        %v332 = vld [vmem:[%s268 + $0x100] sm:$0xff]
        %v333 = vld [vmem:[%s268 + $0x108] sm:$0xff]
        %v334 = vld [vmem:[%s268 + $0x110] sm:$0xff]
        %v335 = vld [vmem:[%s268 + $0x118] sm:$0xff]
        %v336 = vld [vmem:[%s268 + $0x120] sm:$0xff]
        %v337 = vld [vmem:[%s268 + $0x128] sm:$0xff]
        %v338 = vld [vmem:[%s268 + $0x130] sm:$0xff]
        %v339 = vld [vmem:[%s268 + $0x138] sm:$0xff]
        %v340 = vld [vmem:[%s268 + $0x140] sm:$0xff]
        %v341 = vld [vmem:[%s268 + $0x148] sm:$0xff]
        %v342 = vld [vmem:[%s268 + $0x150] sm:$0xff]
        %v343 = vld [vmem:[%s268 + $0x158] sm:$0xff]
        %v344 = vld [vmem:[%s268 + $0x160] sm:$0xff]
        %v345 = vld [vmem:[%s268 + $0x168] sm:$0xff]
        %v346 = vld [vmem:[%s268 + $0x170] sm:$0xff]
        %v347 = vld [vmem:[%s268 + $0x178] sm:$0xff]
        %v348 = vld [vmem:[%s268 + $0x180] sm:$0xff]
        %v349 = vld [vmem:[%s268 + $0x188] sm:$0xff]
        %v350 = vld [vmem:[%s268 + $0x190] sm:$0xff]
        %v351 = vld [vmem:[%s268 + $0x198] sm:$0xff]
        %v352 = vld [vmem:[%s268 + $0x1a0] sm:$0xff]
        %v353 = vld [vmem:[%s268 + $0x1a8] sm:$0xff]
        %v354 = vld [vmem:[%s268 + $0x1b0] sm:$0xff]
        %v355 = vld [vmem:[%s268 + $0x1b8] sm:$0xff]
        %v356 = vld [vmem:[%s268 + $0x1c0] sm:$0xff]
        %v357 = vld [vmem:[%s268 + $0x1c8] sm:$0xff]
        %v358 = vld [vmem:[%s268 + $0x1d0] sm:$0xff]
        %v359 = vld [vmem:[%s268 + $0x1d8] sm:$0xff]
        %v360 = vld [vmem:[%s268 + $0x1e0] sm:$0xff]
        %v361 = vld [vmem:[%s268 + $0x1e8] sm:$0xff]
        %v362 = vld [vmem:[%s268 + $0x1f0] sm:$0xff]
        %v363 = vld [vmem:[%s268 + $0x1f8] sm:$0xff]
        %v364 = vld [vmem:[%s268 + $0x200] sm:$0xff]
        %v365 = vld [vmem:[%s268 + $0x208] sm:$0xff]
        %v366 = vld [vmem:[%s268 + $0x210] sm:$0xff]
        %v367 = vld [vmem:[%s268 + $0x218] sm:$0xff]
        %v368 = vld [vmem:[%s268 + $0x220] sm:$0xff]
        %v369 = vld [vmem:[%s268 + $0x228] sm:$0xff]
        %v370 = vld [vmem:[%s268 + $0x230] sm:$0xff]
        %v371 = vld [vmem:[%s268 + $0x238] sm:$0xff]
        %v372 = vld [vmem:[%s268 + $0x240] sm:$0xff]
        %v373 = vld [vmem:[%s268 + $0x248] sm:$0xff]
        %v374 = vld [vmem:[%s268 + $0x250] sm:$0xff]
        %v375 = vld [vmem:[%s268 + $0x258] sm:$0xff]
        %v376 = vld [vmem:[%s268 + $0x260] sm:$0xff]
        %v377 = vld [vmem:[%s268 + $0x268] sm:$0xff]
        %v378 = vld [vmem:[%s268 + $0x270] sm:$0xff]
        %v379 = vld [vmem:[%s268 + $0x278] sm:$0xff]
        %v380 = vld [vmem:[%s268 + $0x280] sm:$0xff]
        %v381 = vld [vmem:[%s268 + $0x288] sm:$0xff]
        %v382 = vld [vmem:[%s268 + $0x290] sm:$0xff]
        %v383 = vld [vmem:[%s268 + $0x298] sm:$0xff]
        %v384 = vld [vmem:[%s268 + $0x2a0] sm:$0xff]
        %v385 = vld [vmem:[%s268 + $0x2a8] sm:$0xff]
        %v386 = vld [vmem:[%s268 + $0x2b0] sm:$0xff]
        %v387 = vld [vmem:[%s268 + $0x2b8] sm:$0xff]
        %v388 = vld [vmem:[%s268 + $0x2c0] sm:$0xff]
        %v389 = vld [vmem:[%s268 + $0x2c8] sm:$0xff]
        %v390 = vld [vmem:[%s268 + $0x2d0] sm:$0xff]
        %v391 = vld [vmem:[%s268 + $0x2d8] sm:$0xff]
        %v392 = vld [vmem:[%s268 + $0x2e0] sm:$0xff]
        %v393 = vld [vmem:[%s268 + $0x2e8] sm:$0xff]
        %v394 = vld [vmem:[%s268 + $0x2f0] sm:$0xff]
        %v395 = vld [vmem:[%s268 + $0x2f8] sm:$0xff]
        %v396 = vld [vmem:[%s268 + $0x300] sm:$0xff]
        %v397 = vld [vmem:[%s268 + $0x308] sm:$0xff]
        %v398 = vld [vmem:[%s268 + $0x310] sm:$0xff]
        %v399 = vld [vmem:[%s268 + $0x318] sm:$0xff]
        %v400 = vld [vmem:[%s268 + $0x320] sm:$0xff]
        %v401 = vld [vmem:[%s268 + $0x328] sm:$0xff]
        %v402 = vld [vmem:[%s268 + $0x330] sm:$0xff]
        %v403 = vld [vmem:[%s268 + $0x338] sm:$0xff]
        %v404 = vld [vmem:[%s268 + $0x340] sm:$0xff]
        %v405 = vld [vmem:[%s268 + $0x348] sm:$0xff]
        %v406 = vld [vmem:[%s268 + $0x350] sm:$0xff]
        %v407 = vld [vmem:[%s268 + $0x358] sm:$0xff]
        %v408 = vld [vmem:[%s268 + $0x360] sm:$0xff]
        %v409 = vld [vmem:[%s268 + $0x368] sm:$0xff]
        %v410 = vld [vmem:[%s268 + $0x370] sm:$0xff]
        %v411 = vld [vmem:[%s268 + $0x378] sm:$0xff]
        %v412 = vld [vmem:[%s268 + $0x380] sm:$0xff]
        %v413 = vld [vmem:[%s268 + $0x388] sm:$0xff]
        %v414 = vld [vmem:[%s268 + $0x390] sm:$0xff]
        %v415 = vld [vmem:[%s268 + $0x398] sm:$0xff]
        %v416 = vld [vmem:[%s268 + $0x3a0] sm:$0xff]
        %v417 = vld [vmem:[%s268 + $0x3a8] sm:$0xff]
        %v418 = vld [vmem:[%s268 + $0x3b0] sm:$0xff]
        %v419 = vld [vmem:[%s268 + $0x3b8] sm:$0xff]
        %v420 = vld [vmem:[%s268 + $0x3c0] sm:$0xff]
        %v421 = vld [vmem:[%s268 + $0x3c8] sm:$0xff]
        %v422 = vld [vmem:[%s268 + $0x3d0] sm:$0xff]
        %v423 = vld [vmem:[%s268 + $0x3d8] sm:$0xff]
        %v424 = vld [vmem:[%s268 + $0x3e0] sm:$0xff]
        %v425 = vld [vmem:[%s268 + $0x3e8] sm:$0xff]
        %v426 = vld [vmem:[%s268 + $0x3f0] sm:$0xff]
        %v427 = vld [vmem:[%s268 + $0x3f8] sm:$0xff]
        %v428 = vadd.f32 %v300, %v301
        %v429 = vadd.f32 %v428, %v302
        %v430 = vadd.f32 %v429, %v303
        %v431 = vadd.f32 %v430, %v304
        %v432 = vadd.f32 %v431, %v305
        %v433 = vadd.f32 %v432, %v306
        %v434 = vadd.f32 %v433, %v307
        %v435 = vadd.f32 %v434, %v308
        %v436 = vadd.f32 %v435, %v309
        %v437 = vadd.f32 %v436, %v310
        %v438 = vadd.f32 %v437, %v311
        %v439 = vadd.f32 %v438, %v312
        %v440 = vadd.f32 %v439, %v313
        %v441 = vadd.f32 %v440, %v314
        %v442 = vadd.f32 %v441, %v315
        %v443 = vadd.f32 %v442, %v316
        %v444 = vadd.f32 %v443, %v317
        %v445 = vadd.f32 %v444, %v318
        %v446 = vadd.f32 %v445, %v319
        %v447 = vadd.f32 %v446, %v320
        %v448 = vadd.f32 %v447, %v321
        %v449 = vadd.f32 %v448, %v322
        %v450 = vadd.f32 %v449, %v323
        %v451 = vadd.f32 %v450, %v324
        %v452 = vadd.f32 %v451, %v325
        %v453 = vadd.f32 %v452, %v326
        %v454 = vadd.f32 %v453, %v327
        %v455 = vadd.f32 %v454, %v328
        %v456 = vadd.f32 %v455, %v329
        %v457 = vadd.f32 %v456, %v330
        %v458 = vadd.f32 %v457, %v331
        %459 = vadd.xlane.f32.xlu0 %v458
        %v460 = vpop.xlane.xlu0 %459
        %v461 = vadd.f32 %v332, %v333
        %v462 = vadd.f32 %v461, %v334
        %v463 = vadd.f32 %v462, %v335
        %v464 = vadd.f32 %v463, %v336
        %v465 = vadd.f32 %v464, %v337
        %v466 = vadd.f32 %v465, %v338
        %v467 = vadd.f32 %v466, %v339
        %v468 = vadd.f32 %v467, %v340
        %v469 = vadd.f32 %v468, %v341
        %v470 = vadd.f32 %v469, %v342
        %v471 = vadd.f32 %v470, %v343
        %v472 = vadd.f32 %v471, %v344
        %v473 = vadd.f32 %v472, %v345
        %v474 = vadd.f32 %v473, %v346
        %v475 = vadd.f32 %v474, %v347
        %v476 = vadd.f32 %v475, %v348
        %v477 = vadd.f32 %v476, %v349
        %v478 = vadd.f32 %v477, %v350
        %v479 = vadd.f32 %v478, %v351
        %v480 = vadd.f32 %v479, %v352
        %v481 = vadd.f32 %v480, %v353
        %v482 = vadd.f32 %v481, %v354
        %v483 = vadd.f32 %v482, %v355
        %v484 = vadd.f32 %v483, %v356
        %v485 = vadd.f32 %v484, %v357
        %v486 = vadd.f32 %v485, %v358
        %v487 = vadd.f32 %v486, %v359
        %v488 = vadd.f32 %v487, %v360
        %v489 = vadd.f32 %v488, %v361
        %v490 = vadd.f32 %v489, %v362
        %v491 = vadd.f32 %v490, %v363
        %492 = vadd.xlane.f32.xlu0 %v491
        %v493 = vpop.xlane.xlu0 %492
        %v494 = vadd.f32 %v364, %v365
        %v495 = vadd.f32 %v494, %v366
        %v496 = vadd.f32 %v495, %v367
        %v497 = vadd.f32 %v496, %v368
        %v498 = vadd.f32 %v497, %v369
        %v499 = vadd.f32 %v498, %v370
        %v500 = vadd.f32 %v499, %v371
        %v501 = vadd.f32 %v500, %v372
        %v502 = vadd.f32 %v501, %v373
        %v503 = vadd.f32 %v502, %v374
        %v504 = vadd.f32 %v503, %v375
        %v505 = vadd.f32 %v504, %v376
        %v506 = vadd.f32 %v505, %v377
        %v507 = vadd.f32 %v506, %v378
        %v508 = vadd.f32 %v507, %v379
        %v509 = vadd.f32 %v508, %v380
        %v510 = vadd.f32 %v509, %v381
        %v511 = vadd.f32 %v510, %v382
        %v512 = vadd.f32 %v511, %v383
        %v513 = vadd.f32 %v512, %v384
        %v514 = vadd.f32 %v513, %v385
        %v515 = vadd.f32 %v514, %v386
        %v516 = vadd.f32 %v515, %v387
        %v517 = vadd.f32 %v516, %v388
        %v518 = vadd.f32 %v517, %v389
        %v519 = vadd.f32 %v518, %v390
        %v520 = vadd.f32 %v519, %v391
        %v521 = vadd.f32 %v520, %v392
        %v522 = vadd.f32 %v521, %v393
        %v523 = vadd.f32 %v522, %v394
        %v524 = vadd.f32 %v523, %v395
        %525 = vadd.xlane.f32.xlu0 %v524
        %v526 = vpop.xlane.xlu0 %525
        %v527 = vadd.f32 %v396, %v397
        %v528 = vadd.f32 %v527, %v398
        %v529 = vadd.f32 %v528, %v399
        %v530 = vadd.f32 %v529, %v400
        %v531 = vadd.f32 %v530, %v401
        %v532 = vadd.f32 %v531, %v402
        %v533 = vadd.f32 %v532, %v403
        %v534 = vadd.f32 %v533, %v404
        %v535 = vadd.f32 %v534, %v405
        %v536 = vadd.f32 %v535, %v406
        %v537 = vadd.f32 %v536, %v407
        %v538 = vadd.f32 %v537, %v408
        %v539 = vadd.f32 %v538, %v409
        %v540 = vadd.f32 %v539, %v410
        %v541 = vadd.f32 %v540, %v411
        %v542 = vadd.f32 %v541, %v412
        %v543 = vadd.f32 %v542, %v413
        %v544 = vadd.f32 %v543, %v414
        %v545 = vadd.f32 %v544, %v415
        %v546 = vadd.f32 %v545, %v416
        %v547 = vadd.f32 %v546, %v417
        %v548 = vadd.f32 %v547, %v418
        %v549 = vadd.f32 %v548, %v419
        %v550 = vadd.f32 %v549, %v420
        %v551 = vadd.f32 %v550, %v421
        %v552 = vadd.f32 %v551, %v422
        %v553 = vadd.f32 %v552, %v423
        %v554 = vadd.f32 %v553, %v424
        %v555 = vadd.f32 %v554, %v425
        %v556 = vadd.f32 %v555, %v426
        %v557 = vadd.f32 %v556, %v427
        %558 = vadd.xlane.f32.xlu0 %v557
        %v559 = vpop.xlane.xlu0 %558
        %v560 = vmul.f32 %v460, 0.00024414063
        %v561 = vmul.f32 %v493, 0.00024414063
        %v562 = vmul.f32 %v526, 0.00024414063
        %v563 = vmul.f32 %v559, 0.00024414063
        %v564 = vld [vmem:[%s1] sm:$0xff]
        %v565 = vld [vmem:[%s1 + $0x8] sm:$0xff]
        %v566 = vld [vmem:[%s1 + $0x10] sm:$0xff]
        %v567 = vld [vmem:[%s1 + $0x18] sm:$0xff]
        %v568 = vld [vmem:[%s2] sm:$0x1]
        %v569 = vmul.f32 %v564, %v560
        %v570 = vmul.f32 %v565, %v561
        %v571 = vmul.f32 %v566, %v562
        %v572 = vmul.f32 %v567, %v563
        %vm573 = vcmask 15360
        %v574 = vsel %vm573, %v569, 0.0
        %v575 = vsel %vm573, %v570, 0.0
        %v576 = vadd.f32 %v574, %v575
        %v577 = vsel %vm573, %v571, 0.0
        %v578 = vadd.f32 %v576, %v577
        %v579 = vsel %vm573, %v572, 0.0
        %v580 = vadd.f32 %v578, %v579
        %v581 = vrot.slane %v580, 4
        %v582 = vadd.f32 %v580, %v581
        %v583 = vrot.slane %v582, 2
        %v584 = vadd.f32 %v582, %v583
        %v585 = vrot.slane %v584, 1
        %v586 = vadd.f32 %v584, %v585
        %v587 = vadd.f32 %v586, %v568
        %v588 = vmax.f32 %v587, 0.0
        %v589 = vld [vmem:[%s3] sm:$0xff]
        %v590 = vld [vmem:[%s3 + $0x8] sm:$0xff]
        %v591 = vld [vmem:[%s3 + $0x10] sm:$0xff]
        %v592 = vld [vmem:[%s3 + $0x18] sm:$0xff]
        %v593 = vld [vmem:[%s4] sm:$0xff]
        %v594 = vld [vmem:[%s4 + $0x8] sm:$0xff]
        %v595 = vld [vmem:[%s4 + $0x10] sm:$0xff]
        %v596 = vld [vmem:[%s4 + $0x18] sm:$0xff]
        %v597 = vperm.slane %v588, 0
        %v598 = vmul.f32 %v589, %v597
        %v599 = vmul.f32 %v590, %v597
        %v600 = vmul.f32 %v591, %v597
        %v601 = vmul.f32 %v592, %v597
        %v602 = vsel %vm573, %v598, 0.0
        %603 = vadd.xlane.f32.xlu0 %v602
        %v604 = vpop.xlane.xlu0 %603
        %v605 = vsel %vm573, %v599, 0.0
        %606 = vadd.xlane.f32.xlu0 %v605
        %v607 = vpop.xlane.xlu0 %606
        %v608 = vsel %vm573, %v600, 0.0
        %609 = vadd.xlane.f32.xlu0 %v608
        %v610 = vpop.xlane.xlu0 %609
        %v611 = vsel %vm573, %v601, 0.0
        %612 = vadd.xlane.f32.xlu0 %v611
        %v613 = vpop.xlane.xlu0 %612
        %v614 = vadd.f32 %v604, %v593
        %v615 = vadd.f32 %v607, %v594
        %v616 = vadd.f32 %v610, %v595
        %v617 = vadd.f32 %v613, %v596
        %v618 = vxor.u32 %v614, 2147483648
        %v619 = vxor.u32 %v615, 2147483648
        %v620 = vxor.u32 %v616, 2147483648
        %v621 = vxor.u32 %v617, 2147483648
        %v622 = vmul.f32 %v618, 1.442695
        %v623 = vpow.pop %v622
        %v624 = vmul.f32 %v619, 1.442695
        %v625 = vpow.pop %v624
        %v626 = vmul.f32 %v620, 1.442695
        %v627 = vpow.pop %v626
        %v628 = vmul.f32 %v621, 1.442695
        %v629 = vpow.pop %v628
        %v630 = vadd.f32 %v623, 1.0
        %v631 = vadd.f32 %v625, 1.0
        %v632 = vadd.f32 %v627, 1.0
        %v633 = vadd.f32 %v629, 1.0
        %v634 = vrcp.pop %v630
        %v635 = vmul.f32 %v630, %v634
        %v636 = vsub.f32 1.0, %v635
        %v637 = vmul.f32 %v634, %v636
        %v638 = vadd.f32 %v634, %v637
        %vm639 = vweird.f32 %v630
        %vm640 = vweird.f32 %v634
        %vm641 = vmor %vm639, %vm640
        %v642 = vsel %vm641, %v634, %v638
        %v643 = vand.u32 2147483647, %v630
        %vm644 = vcmp.eq.f32.partialorder %v643, 8.507059e+37
        %v645 = vand.u32 %v630, 2147483648
        %v646 = vor.u32 1.1754944e-38, %v645
        %v647 = vsel %vm644, %v646, %v642
        %v648 = vmul.f32 1.0, %v647
        %v649 = vrcp.pop %v631
        %v650 = vmul.f32 %v631, %v649
        %v651 = vsub.f32 1.0, %v650
        %v652 = vmul.f32 %v649, %v651
        %v653 = vadd.f32 %v649, %v652
        %vm654 = vweird.f32 %v631
        %vm655 = vweird.f32 %v649
        %vm656 = vmor %vm654, %vm655
        %v657 = vsel %vm656, %v649, %v653
        %v658 = vand.u32 2147483647, %v631
        %vm659 = vcmp.eq.f32.partialorder %v658, 8.507059e+37
        %v660 = vand.u32 %v631, 2147483648
        %v661 = vor.u32 1.1754944e-38, %v660
        %v662 = vsel %vm659, %v661, %v657
        %v663 = vmul.f32 1.0, %v662
        %v664 = vrcp.pop %v632
        %v665 = vmul.f32 %v632, %v664
        %v666 = vsub.f32 1.0, %v665
        %v667 = vmul.f32 %v664, %v666
        %v668 = vadd.f32 %v664, %v667
        %vm669 = vweird.f32 %v632
        %vm670 = vweird.f32 %v664
        %vm671 = vmor %vm669, %vm670
        %v672 = vsel %vm671, %v664, %v668
        %v673 = vand.u32 2147483647, %v632
        %vm674 = vcmp.eq.f32.partialorder %v673, 8.507059e+37
        %v675 = vand.u32 %v632, 2147483648
        %v676 = vor.u32 1.1754944e-38, %v675
        %v677 = vsel %vm674, %v676, %v672
        %v678 = vmul.f32 1.0, %v677
        %v679 = vrcp.pop %v633
        %v680 = vmul.f32 %v633, %v679
        %v681 = vsub.f32 1.0, %v680
        %v682 = vmul.f32 %v679, %v681
        %v683 = vadd.f32 %v679, %v682
        %vm684 = vweird.f32 %v633
        %vm685 = vweird.f32 %v679
        %vm686 = vmor %vm684, %vm685
        %v687 = vsel %vm686, %v679, %v683
        %v688 = vand.u32 2147483647, %v633
        %vm689 = vcmp.eq.f32.partialorder %v688, 8.507059e+37
        %v690 = vand.u32 %v633, 2147483648
        %v691 = vor.u32 1.1754944e-38, %v690
        %v692 = vsel %vm689, %v691, %v687
        %v693 = vmul.f32 1.0, %v692
        %v694 = vld [vmem:[%s5] sm:$0xff]
        %v695 = vld [vmem:[%s5 + $0x8] sm:$0xff]
        %v696 = vld [vmem:[%s5 + $0x10] sm:$0xff]
        %v697 = vld [vmem:[%s5 + $0x18] sm:$0xff]
        %s698 = sld [smem:[#allocation2]]
        %700 = vset.pattern.permute.xlu0 0
        %701 = vperm.xlu0 %700, %v694
        %v702 = vpop.permute.xlu0 %701
        %705 = vset.pattern.permute.xlu0 0
        %706 = vperm.xlu0 %705, %v695
        %v707 = vpop.permute.xlu0 %706
        %710 = vset.pattern.permute.xlu0 0
        %711 = vperm.xlu0 %710, %v696
        %v712 = vpop.permute.xlu0 %711
        %715 = vset.pattern.permute.xlu0 0
        %716 = vperm.xlu0 %715, %v697
        %v717 = vpop.permute.xlu0 %716
        %v719 = vmul.f32 %v300, %v702
        %v720 = vmul.f32 %v301, %v702
        %v721 = vmul.f32 %v302, %v702
        %v722 = vmul.f32 %v303, %v702
        %v723 = vmul.f32 %v304, %v702
        %v724 = vmul.f32 %v305, %v702
        %v725 = vmul.f32 %v306, %v702
        %v726 = vmul.f32 %v307, %v702
        %v727 = vmul.f32 %v308, %v702
        %v728 = vmul.f32 %v309, %v702
        %v729 = vmul.f32 %v310, %v702
        %v730 = vmul.f32 %v311, %v702
        %v731 = vmul.f32 %v312, %v702
        %v732 = vmul.f32 %v313, %v702
        %v733 = vmul.f32 %v314, %v702
        %v734 = vmul.f32 %v315, %v702
        %v735 = vmul.f32 %v316, %v702
        %v736 = vmul.f32 %v317, %v702
        %v737 = vmul.f32 %v318, %v702
        %v738 = vmul.f32 %v319, %v702
        %v739 = vmul.f32 %v320, %v702
        %v740 = vmul.f32 %v321, %v702
        %v741 = vmul.f32 %v322, %v702
        %v742 = vmul.f32 %v323, %v702
        %v743 = vmul.f32 %v324, %v702
        %v744 = vmul.f32 %v325, %v702
        %v745 = vmul.f32 %v326, %v702
        %v746 = vmul.f32 %v327, %v702
        %v747 = vmul.f32 %v328, %v702
        %v748 = vmul.f32 %v329, %v702
        %v749 = vmul.f32 %v330, %v702
        %v750 = vmul.f32 %v331, %v702
        %v751 = vmul.f32 %v332, %v707
        %v752 = vmul.f32 %v333, %v707
        %v753 = vmul.f32 %v334, %v707
        %v754 = vmul.f32 %v335, %v707
        %v755 = vmul.f32 %v336, %v707
        %v756 = vmul.f32 %v337, %v707
        %v757 = vmul.f32 %v338, %v707
        %v758 = vmul.f32 %v339, %v707
        %v759 = vmul.f32 %v340, %v707
        %v760 = vmul.f32 %v341, %v707
        %v761 = vmul.f32 %v342, %v707
        %v762 = vmul.f32 %v343, %v707
        %v763 = vmul.f32 %v344, %v707
        %v764 = vmul.f32 %v345, %v707
        %v765 = vmul.f32 %v346, %v707
        %v766 = vmul.f32 %v347, %v707
        %v767 = vmul.f32 %v348, %v707
        %v768 = vmul.f32 %v349, %v707
        %v769 = vmul.f32 %v350, %v707
        %v770 = vmul.f32 %v351, %v707
        %v771 = vmul.f32 %v352, %v707
        %v772 = vmul.f32 %v353, %v707
        %v773 = vmul.f32 %v354, %v707
        %v774 = vmul.f32 %v355, %v707
        %v775 = vmul.f32 %v356, %v707
        %v776 = vmul.f32 %v357, %v707
        %v777 = vmul.f32 %v358, %v707
        %v778 = vmul.f32 %v359, %v707
        %v779 = vmul.f32 %v360, %v707
        %v780 = vmul.f32 %v361, %v707
        %v781 = vmul.f32 %v362, %v707
        %v782 = vmul.f32 %v363, %v707
        %v783 = vmul.f32 %v364, %v712
        %v784 = vmul.f32 %v365, %v712
        %v785 = vmul.f32 %v366, %v712
        %v786 = vmul.f32 %v367, %v712
        %v787 = vmul.f32 %v368, %v712
        %v788 = vmul.f32 %v369, %v712
        %v789 = vmul.f32 %v370, %v712
        %v790 = vmul.f32 %v371, %v712
        %v791 = vmul.f32 %v372, %v712
        %v792 = vmul.f32 %v373, %v712
        %v793 = vmul.f32 %v374, %v712
        %v794 = vmul.f32 %v375, %v712
        %v795 = vmul.f32 %v376, %v712
        %v796 = vmul.f32 %v377, %v712
        %v797 = vmul.f32 %v378, %v712
        %v798 = vmul.f32 %v379, %v712
        %v799 = vmul.f32 %v380, %v712
        %v800 = vmul.f32 %v381, %v712
        %v801 = vmul.f32 %v382, %v712
        %v802 = vmul.f32 %v383, %v712
        %v803 = vmul.f32 %v384, %v712
        %v804 = vmul.f32 %v385, %v712
        %v805 = vmul.f32 %v386, %v712
        %v806 = vmul.f32 %v387, %v712
        %v807 = vmul.f32 %v388, %v712
        %v808 = vmul.f32 %v389, %v712
        %v809 = vmul.f32 %v390, %v712
        %v810 = vmul.f32 %v391, %v712
        %v811 = vmul.f32 %v392, %v712
        %v812 = vmul.f32 %v393, %v712
        %v813 = vmul.f32 %v394, %v712
        %v814 = vmul.f32 %v395, %v712
        %v815 = vmul.f32 %v396, %v717
        %v816 = vmul.f32 %v397, %v717
        %v817 = vmul.f32 %v398, %v717
        %v818 = vmul.f32 %v399, %v717
        %v819 = vmul.f32 %v400, %v717
        %v820 = vmul.f32 %v401, %v717
        %v821 = vmul.f32 %v402, %v717
        %v822 = vmul.f32 %v403, %v717
        %v823 = vmul.f32 %v404, %v717
        %v824 = vmul.f32 %v405, %v717
        %v825 = vmul.f32 %v406, %v717
        %v826 = vmul.f32 %v407, %v717
        %v827 = vmul.f32 %v408, %v717
        %v828 = vmul.f32 %v409, %v717
        %v829 = vmul.f32 %v410, %v717
        %v830 = vmul.f32 %v411, %v717
        %v831 = vmul.f32 %v412, %v717
        %v832 = vmul.f32 %v413, %v717
        %v833 = vmul.f32 %v414, %v717
        %v834 = vmul.f32 %v415, %v717
        %v835 = vmul.f32 %v416, %v717
        %v836 = vmul.f32 %v417, %v717
        %v837 = vmul.f32 %v418, %v717
        %v838 = vmul.f32 %v419, %v717
        %v839 = vmul.f32 %v420, %v717
        %v840 = vmul.f32 %v421, %v717
        %v841 = vmul.f32 %v422, %v717
        %v842 = vmul.f32 %v423, %v717
        %v843 = vmul.f32 %v424, %v717
        %v844 = vmul.f32 %v425, %v717
        %v845 = vmul.f32 %v426, %v717
        %v846 = vmul.f32 %v427, %v717
        %v847 = vadd.f32 %v719, %v751
        %v848 = vadd.f32 %v847, %v783
        %v849 = vadd.f32 %v848, %v815
        %v850 = vrot.slane %v849, 4
        %v851 = vadd.f32 %v849, %v850
        %v852 = vrot.slane %v851, 2
        %v853 = vadd.f32 %v851, %v852
        %v854 = vrot.slane %v853, 1
        %v855 = vadd.f32 %v853, %v854
        %v856 = vadd.f32 %v720, %v752
        %v857 = vadd.f32 %v856, %v784
        %v858 = vadd.f32 %v857, %v816
        %v859 = vrot.slane %v858, 4
        %v860 = vadd.f32 %v858, %v859
        %v861 = vrot.slane %v860, 2
        %v862 = vadd.f32 %v860, %v861
        %v863 = vrot.slane %v862, 1
        %v864 = vadd.f32 %v862, %v863
        %v865 = vadd.f32 %v721, %v753
        %v866 = vadd.f32 %v865, %v785
        %v867 = vadd.f32 %v866, %v817
        %v868 = vrot.slane %v867, 4
        %v869 = vadd.f32 %v867, %v868
        %v870 = vrot.slane %v869, 2
        %v871 = vadd.f32 %v869, %v870
        %v872 = vrot.slane %v871, 1
        %v873 = vadd.f32 %v871, %v872
        %v874 = vadd.f32 %v722, %v754
        %v875 = vadd.f32 %v874, %v786
        %v876 = vadd.f32 %v875, %v818
        %v877 = vrot.slane %v876, 4
        %v878 = vadd.f32 %v876, %v877
        %v879 = vrot.slane %v878, 2
        %v880 = vadd.f32 %v878, %v879
        %v881 = vrot.slane %v880, 1
        %v882 = vadd.f32 %v880, %v881
        %v883 = vadd.f32 %v723, %v755
        %v884 = vadd.f32 %v883, %v787
        %v885 = vadd.f32 %v884, %v819
        %v886 = vrot.slane %v885, 4
        %v887 = vadd.f32 %v885, %v886
        %v888 = vrot.slane %v887, 2
        %v889 = vadd.f32 %v887, %v888
        %v890 = vrot.slane %v889, 1
        %v891 = vadd.f32 %v889, %v890
        %v892 = vadd.f32 %v724, %v756
        %v893 = vadd.f32 %v892, %v788
        %v894 = vadd.f32 %v893, %v820
        %v895 = vrot.slane %v894, 4
        %v896 = vadd.f32 %v894, %v895
        %v897 = vrot.slane %v896, 2
        %v898 = vadd.f32 %v896, %v897
        %v899 = vrot.slane %v898, 1
        %v900 = vadd.f32 %v898, %v899
        %v901 = vadd.f32 %v725, %v757
        %v902 = vadd.f32 %v901, %v789
        %v903 = vadd.f32 %v902, %v821
        %v904 = vrot.slane %v903, 4
        %v905 = vadd.f32 %v903, %v904
        %v906 = vrot.slane %v905, 2
        %v907 = vadd.f32 %v905, %v906
        %v908 = vrot.slane %v907, 1
        %v909 = vadd.f32 %v907, %v908
        %v910 = vadd.f32 %v726, %v758
        %v911 = vadd.f32 %v910, %v790
        %v912 = vadd.f32 %v911, %v822
        %v913 = vrot.slane %v912, 4
        %v914 = vadd.f32 %v912, %v913
        %v915 = vrot.slane %v914, 2
        %v916 = vadd.f32 %v914, %v915
        %v917 = vrot.slane %v916, 1
        %v918 = vadd.f32 %v916, %v917
        %v919 = vadd.f32 %v727, %v759
        %v920 = vadd.f32 %v919, %v791
        %v921 = vadd.f32 %v920, %v823
        %v922 = vrot.slane %v921, 4
        %v923 = vadd.f32 %v921, %v922
        %v924 = vrot.slane %v923, 2
        %v925 = vadd.f32 %v923, %v924
        %v926 = vrot.slane %v925, 1
        %v927 = vadd.f32 %v925, %v926
        %v928 = vadd.f32 %v728, %v760
        %v929 = vadd.f32 %v928, %v792
        %v930 = vadd.f32 %v929, %v824
        %v931 = vrot.slane %v930, 4
        %v932 = vadd.f32 %v930, %v931
        %v933 = vrot.slane %v932, 2
        %v934 = vadd.f32 %v932, %v933
        %v935 = vrot.slane %v934, 1
        %v936 = vadd.f32 %v934, %v935
        %v937 = vadd.f32 %v729, %v761
        %v938 = vadd.f32 %v937, %v793
        %v939 = vadd.f32 %v938, %v825
        %v940 = vrot.slane %v939, 4
        %v941 = vadd.f32 %v939, %v940
        %v942 = vrot.slane %v941, 2
        %v943 = vadd.f32 %v941, %v942
        %v944 = vrot.slane %v943, 1
        %v945 = vadd.f32 %v943, %v944
        %v946 = vadd.f32 %v730, %v762
        %v947 = vadd.f32 %v946, %v794
        %v948 = vadd.f32 %v947, %v826
        %v949 = vrot.slane %v948, 4
        %v950 = vadd.f32 %v948, %v949
        %v951 = vrot.slane %v950, 2
        %v952 = vadd.f32 %v950, %v951
        %v953 = vrot.slane %v952, 1
        %v954 = vadd.f32 %v952, %v953
        %v955 = vadd.f32 %v731, %v763
        %v956 = vadd.f32 %v955, %v795
        %v957 = vadd.f32 %v956, %v827
        %v958 = vrot.slane %v957, 4
        %v959 = vadd.f32 %v957, %v958
        %v960 = vrot.slane %v959, 2
        %v961 = vadd.f32 %v959, %v960
        %v962 = vrot.slane %v961, 1
        %v963 = vadd.f32 %v961, %v962
        %v964 = vadd.f32 %v732, %v764
        %v965 = vadd.f32 %v964, %v796
        %v966 = vadd.f32 %v965, %v828
        %v967 = vrot.slane %v966, 4
        %v968 = vadd.f32 %v966, %v967
        %v969 = vrot.slane %v968, 2
        %v970 = vadd.f32 %v968, %v969
        %v971 = vrot.slane %v970, 1
        %v972 = vadd.f32 %v970, %v971
        %v973 = vadd.f32 %v733, %v765
        %v974 = vadd.f32 %v973, %v797
        %v975 = vadd.f32 %v974, %v829
        %v976 = vrot.slane %v975, 4
        %v977 = vadd.f32 %v975, %v976
        %v978 = vrot.slane %v977, 2
        %v979 = vadd.f32 %v977, %v978
        %v980 = vrot.slane %v979, 1
        %v981 = vadd.f32 %v979, %v980
        %v982 = vadd.f32 %v734, %v766
        %v983 = vadd.f32 %v982, %v798
        %v984 = vadd.f32 %v983, %v830
        %v985 = vrot.slane %v984, 4
        %v986 = vadd.f32 %v984, %v985
        %v987 = vrot.slane %v986, 2
        %v988 = vadd.f32 %v986, %v987
        %v989 = vrot.slane %v988, 1
        %v990 = vadd.f32 %v988, %v989
        %v991 = vadd.f32 %v735, %v767
        %v992 = vadd.f32 %v991, %v799
        %v993 = vadd.f32 %v992, %v831
        %v994 = vrot.slane %v993, 4
        %v995 = vadd.f32 %v993, %v994
        %v996 = vrot.slane %v995, 2
        %v997 = vadd.f32 %v995, %v996
        %v998 = vrot.slane %v997, 1
        %v999 = vadd.f32 %v997, %v998
        %v1000 = vadd.f32 %v736, %v768
        %v1001 = vadd.f32 %v1000, %v800
        %v1002 = vadd.f32 %v1001, %v832
        %v1003 = vrot.slane %v1002, 4
        %v1004 = vadd.f32 %v1002, %v1003
        %v1005 = vrot.slane %v1004, 2
        %v1006 = vadd.f32 %v1004, %v1005
        %v1007 = vrot.slane %v1006, 1
        %v1008 = vadd.f32 %v1006, %v1007
        %v1009 = vadd.f32 %v737, %v769
        %v1010 = vadd.f32 %v1009, %v801
        %v1011 = vadd.f32 %v1010, %v833
        %v1012 = vrot.slane %v1011, 4
        %v1013 = vadd.f32 %v1011, %v1012
        %v1014 = vrot.slane %v1013, 2
        %v1015 = vadd.f32 %v1013, %v1014
        %v1016 = vrot.slane %v1015, 1
        %v1017 = vadd.f32 %v1015, %v1016
        %v1018 = vadd.f32 %v738, %v770
        %v1019 = vadd.f32 %v1018, %v802
        %v1020 = vadd.f32 %v1019, %v834
        %v1021 = vrot.slane %v1020, 4
        %v1022 = vadd.f32 %v1020, %v1021
        %v1023 = vrot.slane %v1022, 2
        %v1024 = vadd.f32 %v1022, %v1023
        %v1025 = vrot.slane %v1024, 1
        %v1026 = vadd.f32 %v1024, %v1025
        %v1027 = vadd.f32 %v739, %v771
        %v1028 = vadd.f32 %v1027, %v803
        %v1029 = vadd.f32 %v1028, %v835
        %v1030 = vrot.slane %v1029, 4
        %v1031 = vadd.f32 %v1029, %v1030
        %v1032 = vrot.slane %v1031, 2
        %v1033 = vadd.f32 %v1031, %v1032
        %v1034 = vrot.slane %v1033, 1
        %v1035 = vadd.f32 %v1033, %v1034
        %v1036 = vadd.f32 %v740, %v772
        %v1037 = vadd.f32 %v1036, %v804
        %v1038 = vadd.f32 %v1037, %v836
        %v1039 = vrot.slane %v1038, 4
        %v1040 = vadd.f32 %v1038, %v1039
        %v1041 = vrot.slane %v1040, 2
        %v1042 = vadd.f32 %v1040, %v1041
        %v1043 = vrot.slane %v1042, 1
        %v1044 = vadd.f32 %v1042, %v1043
        %v1045 = vadd.f32 %v741, %v773
        %v1046 = vadd.f32 %v1045, %v805
        %v1047 = vadd.f32 %v1046, %v837
        %v1048 = vrot.slane %v1047, 4
        %v1049 = vadd.f32 %v1047, %v1048
        %v1050 = vrot.slane %v1049, 2
        %v1051 = vadd.f32 %v1049, %v1050
        %v1052 = vrot.slane %v1051, 1
        %v1053 = vadd.f32 %v1051, %v1052
        %v1054 = vadd.f32 %v742, %v774
        %v1055 = vadd.f32 %v1054, %v806
        %v1056 = vadd.f32 %v1055, %v838
        %v1057 = vrot.slane %v1056, 4
        %v1058 = vadd.f32 %v1056, %v1057
        %v1059 = vrot.slane %v1058, 2
        %v1060 = vadd.f32 %v1058, %v1059
        %v1061 = vrot.slane %v1060, 1
        %v1062 = vadd.f32 %v1060, %v1061
        %v1063 = vadd.f32 %v743, %v775
        %v1064 = vadd.f32 %v1063, %v807
        %v1065 = vadd.f32 %v1064, %v839
        %v1066 = vrot.slane %v1065, 4
        %v1067 = vadd.f32 %v1065, %v1066
        %v1068 = vrot.slane %v1067, 2
        %v1069 = vadd.f32 %v1067, %v1068
        %v1070 = vrot.slane %v1069, 1
        %v1071 = vadd.f32 %v1069, %v1070
        %v1072 = vadd.f32 %v744, %v776
        %v1073 = vadd.f32 %v1072, %v808
        %v1074 = vadd.f32 %v1073, %v840
        %v1075 = vrot.slane %v1074, 4
        %v1076 = vadd.f32 %v1074, %v1075
        %v1077 = vrot.slane %v1076, 2
        %v1078 = vadd.f32 %v1076, %v1077
        %v1079 = vrot.slane %v1078, 1
        %v1080 = vadd.f32 %v1078, %v1079
        %v1081 = vadd.f32 %v745, %v777
        %v1082 = vadd.f32 %v1081, %v809
        %v1083 = vadd.f32 %v1082, %v841
        %v1084 = vrot.slane %v1083, 4
        %v1085 = vadd.f32 %v1083, %v1084
        %v1086 = vrot.slane %v1085, 2
        %v1087 = vadd.f32 %v1085, %v1086
        %v1088 = vrot.slane %v1087, 1
        %v1089 = vadd.f32 %v1087, %v1088
        %v1090 = vadd.f32 %v746, %v778
        %v1091 = vadd.f32 %v1090, %v810
        %v1092 = vadd.f32 %v1091, %v842
        %v1093 = vrot.slane %v1092, 4
        %v1094 = vadd.f32 %v1092, %v1093
        %v1095 = vrot.slane %v1094, 2
        %v1096 = vadd.f32 %v1094, %v1095
        %v1097 = vrot.slane %v1096, 1
        %v1098 = vadd.f32 %v1096, %v1097
        %v1099 = vadd.f32 %v747, %v779
        %v1100 = vadd.f32 %v1099, %v811
        %v1101 = vadd.f32 %v1100, %v843
        %v1102 = vrot.slane %v1101, 4
        %v1103 = vadd.f32 %v1101, %v1102
        %v1104 = vrot.slane %v1103, 2
        %v1105 = vadd.f32 %v1103, %v1104
        %v1106 = vrot.slane %v1105, 1
        %v1107 = vadd.f32 %v1105, %v1106
        %v1108 = vadd.f32 %v748, %v780
        %v1109 = vadd.f32 %v1108, %v812
        %v1110 = vadd.f32 %v1109, %v844
        %v1111 = vrot.slane %v1110, 4
        %v1112 = vadd.f32 %v1110, %v1111
        %v1113 = vrot.slane %v1112, 2
        %v1114 = vadd.f32 %v1112, %v1113
        %v1115 = vrot.slane %v1114, 1
        %v1116 = vadd.f32 %v1114, %v1115
        %v1117 = vadd.f32 %v749, %v781
        %v1118 = vadd.f32 %v1117, %v813
        %v1119 = vadd.f32 %v1118, %v845
        %v1120 = vrot.slane %v1119, 4
        %v1121 = vadd.f32 %v1119, %v1120
        %v1122 = vrot.slane %v1121, 2
        %v1123 = vadd.f32 %v1121, %v1122
        %v1124 = vrot.slane %v1123, 1
        %v1125 = vadd.f32 %v1123, %v1124
        %v1126 = vadd.f32 %v750, %v782
        %v1127 = vadd.f32 %v1126, %v814
        %v1128 = vadd.f32 %v1127, %v846
        %v1129 = vrot.slane %v1128, 4
        %v1130 = vadd.f32 %v1128, %v1129
        %v1131 = vrot.slane %v1130, 2
        %v1132 = vadd.f32 %v1130, %v1131
        %v1133 = vrot.slane %v1132, 1
        %v1134 = vadd.f32 %v1132, %v1133
        %v1135 = vstv %s698
        %v1136 = vadd.f32 %v855, %v1135
        %v1137 = vadd.f32 %v864, %v1135
        %v1138 = vadd.f32 %v873, %v1135
        %v1139 = vadd.f32 %v882, %v1135
        %v1140 = vadd.f32 %v891, %v1135
        %v1141 = vadd.f32 %v900, %v1135
        %v1142 = vadd.f32 %v909, %v1135
        %v1143 = vadd.f32 %v918, %v1135
        %v1144 = vadd.f32 %v927, %v1135
        %v1145 = vadd.f32 %v936, %v1135
        %v1146 = vadd.f32 %v945, %v1135
        %v1147 = vadd.f32 %v954, %v1135
        %v1148 = vadd.f32 %v963, %v1135
        %v1149 = vadd.f32 %v972, %v1135
        %v1150 = vadd.f32 %v981, %v1135
        %v1151 = vadd.f32 %v990, %v1135
        %v1152 = vadd.f32 %v999, %v1135
        %v1153 = vadd.f32 %v1008, %v1135
        %v1154 = vadd.f32 %v1017, %v1135
        %v1155 = vadd.f32 %v1026, %v1135
        %v1156 = vadd.f32 %v1035, %v1135
        %v1157 = vadd.f32 %v1044, %v1135
        %v1158 = vadd.f32 %v1053, %v1135
        %v1159 = vadd.f32 %v1062, %v1135
        %v1160 = vadd.f32 %v1071, %v1135
        %v1161 = vadd.f32 %v1080, %v1135
        %v1162 = vadd.f32 %v1089, %v1135
        %v1163 = vadd.f32 %v1098, %v1135
        %v1164 = vadd.f32 %v1107, %v1135
        %v1165 = vadd.f32 %v1116, %v1135
        %v1166 = vadd.f32 %v1125, %v1135
        %v1167 = vadd.f32 %v1134, %v1135
        %v1168 = vxor.u32 %v1136, 2147483648
        %v1169 = vxor.u32 %v1137, 2147483648
        %v1170 = vxor.u32 %v1138, 2147483648
        %v1171 = vxor.u32 %v1139, 2147483648
        %v1172 = vxor.u32 %v1140, 2147483648
        %v1173 = vxor.u32 %v1141, 2147483648
        %v1174 = vxor.u32 %v1142, 2147483648
        %v1175 = vxor.u32 %v1143, 2147483648
        %v1176 = vxor.u32 %v1144, 2147483648
        %v1177 = vxor.u32 %v1145, 2147483648
        %v1178 = vxor.u32 %v1146, 2147483648
        %v1179 = vxor.u32 %v1147, 2147483648
        %v1180 = vxor.u32 %v1148, 2147483648
        %v1181 = vxor.u32 %v1149, 2147483648
        %v1182 = vxor.u32 %v1150, 2147483648
        %v1183 = vxor.u32 %v1151, 2147483648
        %v1184 = vxor.u32 %v1152, 2147483648
        %v1185 = vxor.u32 %v1153, 2147483648
        %v1186 = vxor.u32 %v1154, 2147483648
        %v1187 = vxor.u32 %v1155, 2147483648
        %v1188 = vxor.u32 %v1156, 2147483648
        %v1189 = vxor.u32 %v1157, 2147483648
        %v1190 = vxor.u32 %v1158, 2147483648
        %v1191 = vxor.u32 %v1159, 2147483648
        %v1192 = vxor.u32 %v1160, 2147483648
        %v1193 = vxor.u32 %v1161, 2147483648
        %v1194 = vxor.u32 %v1162, 2147483648
        %v1195 = vxor.u32 %v1163, 2147483648
        %v1196 = vxor.u32 %v1164, 2147483648
        %v1197 = vxor.u32 %v1165, 2147483648
        %v1198 = vxor.u32 %v1166, 2147483648
        %v1199 = vxor.u32 %v1167, 2147483648
        %v1200 = vmul.f32 %v1168, 1.442695
        %v1201 = vpow.pop %v1200
        %v1202 = vmul.f32 %v1169, 1.442695
        %v1203 = vpow.pop %v1202
        %v1204 = vmul.f32 %v1170, 1.442695
        %v1205 = vpow.pop %v1204
        %v1206 = vmul.f32 %v1171, 1.442695
        %v1207 = vpow.pop %v1206
        %v1208 = vmul.f32 %v1172, 1.442695
        %v1209 = vpow.pop %v1208
        %v1210 = vmul.f32 %v1173, 1.442695
        %v1211 = vpow.pop %v1210
        %v1212 = vmul.f32 %v1174, 1.442695
        %v1213 = vpow.pop %v1212
        %v1214 = vmul.f32 %v1175, 1.442695
        %v1215 = vpow.pop %v1214
        %v1216 = vmul.f32 %v1176, 1.442695
        %v1217 = vpow.pop %v1216
        %v1218 = vmul.f32 %v1177, 1.442695
        %v1219 = vpow.pop %v1218
        %v1220 = vmul.f32 %v1178, 1.442695
        %v1221 = vpow.pop %v1220
        %v1222 = vmul.f32 %v1179, 1.442695
        %v1223 = vpow.pop %v1222
        %v1224 = vmul.f32 %v1180, 1.442695
        %v1225 = vpow.pop %v1224
        %v1226 = vmul.f32 %v1181, 1.442695
        %v1227 = vpow.pop %v1226
        %v1228 = vmul.f32 %v1182, 1.442695
        %v1229 = vpow.pop %v1228
        %v1230 = vmul.f32 %v1183, 1.442695
        %v1231 = vpow.pop %v1230
        %v1232 = vmul.f32 %v1184, 1.442695
        %v1233 = vpow.pop %v1232
        %v1234 = vmul.f32 %v1185, 1.442695
        %v1235 = vpow.pop %v1234
        %v1236 = vmul.f32 %v1186, 1.442695
        %v1237 = vpow.pop %v1236
        %v1238 = vmul.f32 %v1187, 1.442695
        %v1239 = vpow.pop %v1238
        %v1240 = vmul.f32 %v1188, 1.442695
        %v1241 = vpow.pop %v1240
        %v1242 = vmul.f32 %v1189, 1.442695
        %v1243 = vpow.pop %v1242
        %v1244 = vmul.f32 %v1190, 1.442695
        %v1245 = vpow.pop %v1244
        %v1246 = vmul.f32 %v1191, 1.442695
        %v1247 = vpow.pop %v1246
        %v1248 = vmul.f32 %v1192, 1.442695
        %v1249 = vpow.pop %v1248
        %v1250 = vmul.f32 %v1193, 1.442695
        %v1251 = vpow.pop %v1250
        %v1252 = vmul.f32 %v1194, 1.442695
        %v1253 = vpow.pop %v1252
        %v1254 = vmul.f32 %v1195, 1.442695
        %v1255 = vpow.pop %v1254
        %v1256 = vmul.f32 %v1196, 1.442695
        %v1257 = vpow.pop %v1256
        %v1258 = vmul.f32 %v1197, 1.442695
        %v1259 = vpow.pop %v1258
        %v1260 = vmul.f32 %v1198, 1.442695
        %v1261 = vpow.pop %v1260
        %v1262 = vmul.f32 %v1199, 1.442695
        %v1263 = vpow.pop %v1262
        %v1264 = vadd.f32 %v1201, 1.0
        %v1265 = vadd.f32 %v1203, 1.0
        %v1266 = vadd.f32 %v1205, 1.0
        %v1267 = vadd.f32 %v1207, 1.0
        %v1268 = vadd.f32 %v1209, 1.0
        %v1269 = vadd.f32 %v1211, 1.0
        %v1270 = vadd.f32 %v1213, 1.0
        %v1271 = vadd.f32 %v1215, 1.0
        %v1272 = vadd.f32 %v1217, 1.0
        %v1273 = vadd.f32 %v1219, 1.0
        %v1274 = vadd.f32 %v1221, 1.0
        %v1275 = vadd.f32 %v1223, 1.0
        %v1276 = vadd.f32 %v1225, 1.0
        %v1277 = vadd.f32 %v1227, 1.0
        %v1278 = vadd.f32 %v1229, 1.0
        %v1279 = vadd.f32 %v1231, 1.0
        %v1280 = vadd.f32 %v1233, 1.0
        %v1281 = vadd.f32 %v1235, 1.0
        %v1282 = vadd.f32 %v1237, 1.0
        %v1283 = vadd.f32 %v1239, 1.0
        %v1284 = vadd.f32 %v1241, 1.0
        %v1285 = vadd.f32 %v1243, 1.0
        %v1286 = vadd.f32 %v1245, 1.0
        %v1287 = vadd.f32 %v1247, 1.0
        %v1288 = vadd.f32 %v1249, 1.0
        %v1289 = vadd.f32 %v1251, 1.0
        %v1290 = vadd.f32 %v1253, 1.0
        %v1291 = vadd.f32 %v1255, 1.0
        %v1292 = vadd.f32 %v1257, 1.0
        %v1293 = vadd.f32 %v1259, 1.0
        %v1294 = vadd.f32 %v1261, 1.0
        %v1295 = vadd.f32 %v1263, 1.0
        %v1296 = vrcp.pop %v1264
        %v1297 = vmul.f32 %v1264, %v1296
        %v1298 = vsub.f32 1.0, %v1297
        %v1299 = vmul.f32 %v1296, %v1298
        %v1300 = vadd.f32 %v1296, %v1299
        %vm1301 = vweird.f32 %v1264
        %vm1302 = vweird.f32 %v1296
        %vm1303 = vmor %vm1301, %vm1302
        %v1304 = vsel %vm1303, %v1296, %v1300
        %v1305 = vand.u32 2147483647, %v1264
        %vm1306 = vcmp.eq.f32.partialorder %v1305, 8.507059e+37
        %v1307 = vand.u32 %v1264, 2147483648
        %v1308 = vor.u32 1.1754944e-38, %v1307
        %v1309 = vsel %vm1306, %v1308, %v1304
        %v1310 = vmul.f32 1.0, %v1309
        %v1311 = vrcp.pop %v1265
        %v1312 = vmul.f32 %v1265, %v1311
        %v1313 = vsub.f32 1.0, %v1312
        %v1314 = vmul.f32 %v1311, %v1313
        %v1315 = vadd.f32 %v1311, %v1314
        %vm1316 = vweird.f32 %v1265
        %vm1317 = vweird.f32 %v1311
        %vm1318 = vmor %vm1316, %vm1317
        %v1319 = vsel %vm1318, %v1311, %v1315
        %v1320 = vand.u32 2147483647, %v1265
        %vm1321 = vcmp.eq.f32.partialorder %v1320, 8.507059e+37
        %v1322 = vand.u32 %v1265, 2147483648
        %v1323 = vor.u32 1.1754944e-38, %v1322
        %v1324 = vsel %vm1321, %v1323, %v1319
        %v1325 = vmul.f32 1.0, %v1324
        %v1326 = vrcp.pop %v1266
        %v1327 = vmul.f32 %v1266, %v1326
        %v1328 = vsub.f32 1.0, %v1327
        %v1329 = vmul.f32 %v1326, %v1328
        %v1330 = vadd.f32 %v1326, %v1329
        %vm1331 = vweird.f32 %v1266
        %vm1332 = vweird.f32 %v1326
        %vm1333 = vmor %vm1331, %vm1332
        %v1334 = vsel %vm1333, %v1326, %v1330
        %v1335 = vand.u32 2147483647, %v1266
        %vm1336 = vcmp.eq.f32.partialorder %v1335, 8.507059e+37
        %v1337 = vand.u32 %v1266, 2147483648
        %v1338 = vor.u32 1.1754944e-38, %v1337
        %v1339 = vsel %vm1336, %v1338, %v1334
        %v1340 = vmul.f32 1.0, %v1339
        %v1341 = vrcp.pop %v1267
        %v1342 = vmul.f32 %v1267, %v1341
        %v1343 = vsub.f32 1.0, %v1342
        %v1344 = vmul.f32 %v1341, %v1343
        %v1345 = vadd.f32 %v1341, %v1344
        %vm1346 = vweird.f32 %v1267
        %vm1347 = vweird.f32 %v1341
        %vm1348 = vmor %vm1346, %vm1347
        %v1349 = vsel %vm1348, %v1341, %v1345
        %v1350 = vand.u32 2147483647, %v1267
        %vm1351 = vcmp.eq.f32.partialorder %v1350, 8.507059e+37
        %v1352 = vand.u32 %v1267, 2147483648
        %v1353 = vor.u32 1.1754944e-38, %v1352
        %v1354 = vsel %vm1351, %v1353, %v1349
        %v1355 = vmul.f32 1.0, %v1354
        %v1356 = vrcp.pop %v1268
        %v1357 = vmul.f32 %v1268, %v1356
        %v1358 = vsub.f32 1.0, %v1357
        %v1359 = vmul.f32 %v1356, %v1358
        %v1360 = vadd.f32 %v1356, %v1359
        %vm1361 = vweird.f32 %v1268
        %vm1362 = vweird.f32 %v1356
        %vm1363 = vmor %vm1361, %vm1362
        %v1364 = vsel %vm1363, %v1356, %v1360
        %v1365 = vand.u32 2147483647, %v1268
        %vm1366 = vcmp.eq.f32.partialorder %v1365, 8.507059e+37
        %v1367 = vand.u32 %v1268, 2147483648
        %v1368 = vor.u32 1.1754944e-38, %v1367
        %v1369 = vsel %vm1366, %v1368, %v1364
        %v1370 = vmul.f32 1.0, %v1369
        %v1371 = vrcp.pop %v1269
        %v1372 = vmul.f32 %v1269, %v1371
        %v1373 = vsub.f32 1.0, %v1372
        %v1374 = vmul.f32 %v1371, %v1373
        %v1375 = vadd.f32 %v1371, %v1374
        %vm1376 = vweird.f32 %v1269
        %vm1377 = vweird.f32 %v1371
        %vm1378 = vmor %vm1376, %vm1377
        %v1379 = vsel %vm1378, %v1371, %v1375
        %v1380 = vand.u32 2147483647, %v1269
        %vm1381 = vcmp.eq.f32.partialorder %v1380, 8.507059e+37
        %v1382 = vand.u32 %v1269, 2147483648
        %v1383 = vor.u32 1.1754944e-38, %v1382
        %v1384 = vsel %vm1381, %v1383, %v1379
        %v1385 = vmul.f32 1.0, %v1384
        %v1386 = vrcp.pop %v1270
        %v1387 = vmul.f32 %v1270, %v1386
        %v1388 = vsub.f32 1.0, %v1387
        %v1389 = vmul.f32 %v1386, %v1388
        %v1390 = vadd.f32 %v1386, %v1389
        %vm1391 = vweird.f32 %v1270
        %vm1392 = vweird.f32 %v1386
        %vm1393 = vmor %vm1391, %vm1392
        %v1394 = vsel %vm1393, %v1386, %v1390
        %v1395 = vand.u32 2147483647, %v1270
        %vm1396 = vcmp.eq.f32.partialorder %v1395, 8.507059e+37
        %v1397 = vand.u32 %v1270, 2147483648
        %v1398 = vor.u32 1.1754944e-38, %v1397
        %v1399 = vsel %vm1396, %v1398, %v1394
        %v1400 = vmul.f32 1.0, %v1399
        %v1401 = vrcp.pop %v1271
        %v1402 = vmul.f32 %v1271, %v1401
        %v1403 = vsub.f32 1.0, %v1402
        %v1404 = vmul.f32 %v1401, %v1403
        %v1405 = vadd.f32 %v1401, %v1404
        %vm1406 = vweird.f32 %v1271
        %vm1407 = vweird.f32 %v1401
        %vm1408 = vmor %vm1406, %vm1407
        %v1409 = vsel %vm1408, %v1401, %v1405
        %v1410 = vand.u32 2147483647, %v1271
        %vm1411 = vcmp.eq.f32.partialorder %v1410, 8.507059e+37
        %v1412 = vand.u32 %v1271, 2147483648
        %v1413 = vor.u32 1.1754944e-38, %v1412
        %v1414 = vsel %vm1411, %v1413, %v1409
        %v1415 = vmul.f32 1.0, %v1414
        %v1416 = vrcp.pop %v1272
        %v1417 = vmul.f32 %v1272, %v1416
        %v1418 = vsub.f32 1.0, %v1417
        %v1419 = vmul.f32 %v1416, %v1418
        %v1420 = vadd.f32 %v1416, %v1419
        %vm1421 = vweird.f32 %v1272
        %vm1422 = vweird.f32 %v1416
        %vm1423 = vmor %vm1421, %vm1422
        %v1424 = vsel %vm1423, %v1416, %v1420
        %v1425 = vand.u32 2147483647, %v1272
        %vm1426 = vcmp.eq.f32.partialorder %v1425, 8.507059e+37
        %v1427 = vand.u32 %v1272, 2147483648
        %v1428 = vor.u32 1.1754944e-38, %v1427
        %v1429 = vsel %vm1426, %v1428, %v1424
        %v1430 = vmul.f32 1.0, %v1429
        %v1431 = vrcp.pop %v1273
        %v1432 = vmul.f32 %v1273, %v1431
        %v1433 = vsub.f32 1.0, %v1432
        %v1434 = vmul.f32 %v1431, %v1433
        %v1435 = vadd.f32 %v1431, %v1434
        %vm1436 = vweird.f32 %v1273
        %vm1437 = vweird.f32 %v1431
        %vm1438 = vmor %vm1436, %vm1437
        %v1439 = vsel %vm1438, %v1431, %v1435
        %v1440 = vand.u32 2147483647, %v1273
        %vm1441 = vcmp.eq.f32.partialorder %v1440, 8.507059e+37
        %v1442 = vand.u32 %v1273, 2147483648
        %v1443 = vor.u32 1.1754944e-38, %v1442
        %v1444 = vsel %vm1441, %v1443, %v1439
        %v1445 = vmul.f32 1.0, %v1444
        %v1446 = vrcp.pop %v1274
        %v1447 = vmul.f32 %v1274, %v1446
        %v1448 = vsub.f32 1.0, %v1447
        %v1449 = vmul.f32 %v1446, %v1448
        %v1450 = vadd.f32 %v1446, %v1449
        %vm1451 = vweird.f32 %v1274
        %vm1452 = vweird.f32 %v1446
        %vm1453 = vmor %vm1451, %vm1452
        %v1454 = vsel %vm1453, %v1446, %v1450
        %v1455 = vand.u32 2147483647, %v1274
        %vm1456 = vcmp.eq.f32.partialorder %v1455, 8.507059e+37
        %v1457 = vand.u32 %v1274, 2147483648
        %v1458 = vor.u32 1.1754944e-38, %v1457
        %v1459 = vsel %vm1456, %v1458, %v1454
        %v1460 = vmul.f32 1.0, %v1459
        %v1461 = vrcp.pop %v1275
        %v1462 = vmul.f32 %v1275, %v1461
        %v1463 = vsub.f32 1.0, %v1462
        %v1464 = vmul.f32 %v1461, %v1463
        %v1465 = vadd.f32 %v1461, %v1464
        %vm1466 = vweird.f32 %v1275
        %vm1467 = vweird.f32 %v1461
        %vm1468 = vmor %vm1466, %vm1467
        %v1469 = vsel %vm1468, %v1461, %v1465
        %v1470 = vand.u32 2147483647, %v1275
        %vm1471 = vcmp.eq.f32.partialorder %v1470, 8.507059e+37
        %v1472 = vand.u32 %v1275, 2147483648
        %v1473 = vor.u32 1.1754944e-38, %v1472
        %v1474 = vsel %vm1471, %v1473, %v1469
        %v1475 = vmul.f32 1.0, %v1474
        %v1476 = vrcp.pop %v1276
        %v1477 = vmul.f32 %v1276, %v1476
        %v1478 = vsub.f32 1.0, %v1477
        %v1479 = vmul.f32 %v1476, %v1478
        %v1480 = vadd.f32 %v1476, %v1479
        %vm1481 = vweird.f32 %v1276
        %vm1482 = vweird.f32 %v1476
        %vm1483 = vmor %vm1481, %vm1482
        %v1484 = vsel %vm1483, %v1476, %v1480
        %v1485 = vand.u32 2147483647, %v1276
        %vm1486 = vcmp.eq.f32.partialorder %v1485, 8.507059e+37
        %v1487 = vand.u32 %v1276, 2147483648
        %v1488 = vor.u32 1.1754944e-38, %v1487
        %v1489 = vsel %vm1486, %v1488, %v1484
        %v1490 = vmul.f32 1.0, %v1489
        %v1491 = vrcp.pop %v1277
        %v1492 = vmul.f32 %v1277, %v1491
        %v1493 = vsub.f32 1.0, %v1492
        %v1494 = vmul.f32 %v1491, %v1493
        %v1495 = vadd.f32 %v1491, %v1494
        %vm1496 = vweird.f32 %v1277
        %vm1497 = vweird.f32 %v1491
        %vm1498 = vmor %vm1496, %vm1497
        %v1499 = vsel %vm1498, %v1491, %v1495
        %v1500 = vand.u32 2147483647, %v1277
        %vm1501 = vcmp.eq.f32.partialorder %v1500, 8.507059e+37
        %v1502 = vand.u32 %v1277, 2147483648
        %v1503 = vor.u32 1.1754944e-38, %v1502
        %v1504 = vsel %vm1501, %v1503, %v1499
        %v1505 = vmul.f32 1.0, %v1504
        %v1506 = vrcp.pop %v1278
        %v1507 = vmul.f32 %v1278, %v1506
        %v1508 = vsub.f32 1.0, %v1507
        %v1509 = vmul.f32 %v1506, %v1508
        %v1510 = vadd.f32 %v1506, %v1509
        %vm1511 = vweird.f32 %v1278
        %vm1512 = vweird.f32 %v1506
        %vm1513 = vmor %vm1511, %vm1512
        %v1514 = vsel %vm1513, %v1506, %v1510
        %v1515 = vand.u32 2147483647, %v1278
        %vm1516 = vcmp.eq.f32.partialorder %v1515, 8.507059e+37
        %v1517 = vand.u32 %v1278, 2147483648
        %v1518 = vor.u32 1.1754944e-38, %v1517
        %v1519 = vsel %vm1516, %v1518, %v1514
        %v1520 = vmul.f32 1.0, %v1519
        %v1521 = vrcp.pop %v1279
        %v1522 = vmul.f32 %v1279, %v1521
        %v1523 = vsub.f32 1.0, %v1522
        %v1524 = vmul.f32 %v1521, %v1523
        %v1525 = vadd.f32 %v1521, %v1524
        %vm1526 = vweird.f32 %v1279
        %vm1527 = vweird.f32 %v1521
        %vm1528 = vmor %vm1526, %vm1527
        %v1529 = vsel %vm1528, %v1521, %v1525
        %v1530 = vand.u32 2147483647, %v1279
        %vm1531 = vcmp.eq.f32.partialorder %v1530, 8.507059e+37
        %v1532 = vand.u32 %v1279, 2147483648
        %v1533 = vor.u32 1.1754944e-38, %v1532
        %v1534 = vsel %vm1531, %v1533, %v1529
        %v1535 = vmul.f32 1.0, %v1534
        %v1536 = vrcp.pop %v1280
        %v1537 = vmul.f32 %v1280, %v1536
        %v1538 = vsub.f32 1.0, %v1537
        %v1539 = vmul.f32 %v1536, %v1538
        %v1540 = vadd.f32 %v1536, %v1539
        %vm1541 = vweird.f32 %v1280
        %vm1542 = vweird.f32 %v1536
        %vm1543 = vmor %vm1541, %vm1542
        %v1544 = vsel %vm1543, %v1536, %v1540
        %v1545 = vand.u32 2147483647, %v1280
        %vm1546 = vcmp.eq.f32.partialorder %v1545, 8.507059e+37
        %v1547 = vand.u32 %v1280, 2147483648
        %v1548 = vor.u32 1.1754944e-38, %v1547
        %v1549 = vsel %vm1546, %v1548, %v1544
        %v1550 = vmul.f32 1.0, %v1549
        %v1551 = vrcp.pop %v1281
        %v1552 = vmul.f32 %v1281, %v1551
        %v1553 = vsub.f32 1.0, %v1552
        %v1554 = vmul.f32 %v1551, %v1553
        %v1555 = vadd.f32 %v1551, %v1554
        %vm1556 = vweird.f32 %v1281
        %vm1557 = vweird.f32 %v1551
        %vm1558 = vmor %vm1556, %vm1557
        %v1559 = vsel %vm1558, %v1551, %v1555
        %v1560 = vand.u32 2147483647, %v1281
        %vm1561 = vcmp.eq.f32.partialorder %v1560, 8.507059e+37
        %v1562 = vand.u32 %v1281, 2147483648
        %v1563 = vor.u32 1.1754944e-38, %v1562
        %v1564 = vsel %vm1561, %v1563, %v1559
        %v1565 = vmul.f32 1.0, %v1564
        %v1566 = vrcp.pop %v1282
        %v1567 = vmul.f32 %v1282, %v1566
        %v1568 = vsub.f32 1.0, %v1567
        %v1569 = vmul.f32 %v1566, %v1568
        %v1570 = vadd.f32 %v1566, %v1569
        %vm1571 = vweird.f32 %v1282
        %vm1572 = vweird.f32 %v1566
        %vm1573 = vmor %vm1571, %vm1572
        %v1574 = vsel %vm1573, %v1566, %v1570
        %v1575 = vand.u32 2147483647, %v1282
        %vm1576 = vcmp.eq.f32.partialorder %v1575, 8.507059e+37
        %v1577 = vand.u32 %v1282, 2147483648
        %v1578 = vor.u32 1.1754944e-38, %v1577
        %v1579 = vsel %vm1576, %v1578, %v1574
        %v1580 = vmul.f32 1.0, %v1579
        %v1581 = vrcp.pop %v1283
        %v1582 = vmul.f32 %v1283, %v1581
        %v1583 = vsub.f32 1.0, %v1582
        %v1584 = vmul.f32 %v1581, %v1583
        %v1585 = vadd.f32 %v1581, %v1584
        %vm1586 = vweird.f32 %v1283
        %vm1587 = vweird.f32 %v1581
        %vm1588 = vmor %vm1586, %vm1587
        %v1589 = vsel %vm1588, %v1581, %v1585
        %v1590 = vand.u32 2147483647, %v1283
        %vm1591 = vcmp.eq.f32.partialorder %v1590, 8.507059e+37
        %v1592 = vand.u32 %v1283, 2147483648
        %v1593 = vor.u32 1.1754944e-38, %v1592
        %v1594 = vsel %vm1591, %v1593, %v1589
        %v1595 = vmul.f32 1.0, %v1594
        %v1596 = vrcp.pop %v1284
        %v1597 = vmul.f32 %v1284, %v1596
        %v1598 = vsub.f32 1.0, %v1597
        %v1599 = vmul.f32 %v1596, %v1598
        %v1600 = vadd.f32 %v1596, %v1599
        %vm1601 = vweird.f32 %v1284
        %vm1602 = vweird.f32 %v1596
        %vm1603 = vmor %vm1601, %vm1602
        %v1604 = vsel %vm1603, %v1596, %v1600
        %v1605 = vand.u32 2147483647, %v1284
        %vm1606 = vcmp.eq.f32.partialorder %v1605, 8.507059e+37
        %v1607 = vand.u32 %v1284, 2147483648
        %v1608 = vor.u32 1.1754944e-38, %v1607
        %v1609 = vsel %vm1606, %v1608, %v1604
        %v1610 = vmul.f32 1.0, %v1609
        %v1611 = vrcp.pop %v1285
        %v1612 = vmul.f32 %v1285, %v1611
        %v1613 = vsub.f32 1.0, %v1612
        %v1614 = vmul.f32 %v1611, %v1613
        %v1615 = vadd.f32 %v1611, %v1614
        %vm1616 = vweird.f32 %v1285
        %vm1617 = vweird.f32 %v1611
        %vm1618 = vmor %vm1616, %vm1617
        %v1619 = vsel %vm1618, %v1611, %v1615
        %v1620 = vand.u32 2147483647, %v1285
        %vm1621 = vcmp.eq.f32.partialorder %v1620, 8.507059e+37
        %v1622 = vand.u32 %v1285, 2147483648
        %v1623 = vor.u32 1.1754944e-38, %v1622
        %v1624 = vsel %vm1621, %v1623, %v1619
        %v1625 = vmul.f32 1.0, %v1624
        %v1626 = vrcp.pop %v1286
        %v1627 = vmul.f32 %v1286, %v1626
        %v1628 = vsub.f32 1.0, %v1627
        %v1629 = vmul.f32 %v1626, %v1628
        %v1630 = vadd.f32 %v1626, %v1629
        %vm1631 = vweird.f32 %v1286
        %vm1632 = vweird.f32 %v1626
        %vm1633 = vmor %vm1631, %vm1632
        %v1634 = vsel %vm1633, %v1626, %v1630
        %v1635 = vand.u32 2147483647, %v1286
        %vm1636 = vcmp.eq.f32.partialorder %v1635, 8.507059e+37
        %v1637 = vand.u32 %v1286, 2147483648
        %v1638 = vor.u32 1.1754944e-38, %v1637
        %v1639 = vsel %vm1636, %v1638, %v1634
        %v1640 = vmul.f32 1.0, %v1639
        %v1641 = vrcp.pop %v1287
        %v1642 = vmul.f32 %v1287, %v1641
        %v1643 = vsub.f32 1.0, %v1642
        %v1644 = vmul.f32 %v1641, %v1643
        %v1645 = vadd.f32 %v1641, %v1644
        %vm1646 = vweird.f32 %v1287
        %vm1647 = vweird.f32 %v1641
        %vm1648 = vmor %vm1646, %vm1647
        %v1649 = vsel %vm1648, %v1641, %v1645
        %v1650 = vand.u32 2147483647, %v1287
        %vm1651 = vcmp.eq.f32.partialorder %v1650, 8.507059e+37
        %v1652 = vand.u32 %v1287, 2147483648
        %v1653 = vor.u32 1.1754944e-38, %v1652
        %v1654 = vsel %vm1651, %v1653, %v1649
        %v1655 = vmul.f32 1.0, %v1654
        %v1656 = vrcp.pop %v1288
        %v1657 = vmul.f32 %v1288, %v1656
        %v1658 = vsub.f32 1.0, %v1657
        %v1659 = vmul.f32 %v1656, %v1658
        %v1660 = vadd.f32 %v1656, %v1659
        %vm1661 = vweird.f32 %v1288
        %vm1662 = vweird.f32 %v1656
        %vm1663 = vmor %vm1661, %vm1662
        %v1664 = vsel %vm1663, %v1656, %v1660
        %v1665 = vand.u32 2147483647, %v1288
        %vm1666 = vcmp.eq.f32.partialorder %v1665, 8.507059e+37
        %v1667 = vand.u32 %v1288, 2147483648
        %v1668 = vor.u32 1.1754944e-38, %v1667
        %v1669 = vsel %vm1666, %v1668, %v1664
        %v1670 = vmul.f32 1.0, %v1669
        %v1671 = vrcp.pop %v1289
        %v1672 = vmul.f32 %v1289, %v1671
        %v1673 = vsub.f32 1.0, %v1672
        %v1674 = vmul.f32 %v1671, %v1673
        %v1675 = vadd.f32 %v1671, %v1674
        %vm1676 = vweird.f32 %v1289
        %vm1677 = vweird.f32 %v1671
        %vm1678 = vmor %vm1676, %vm1677
        %v1679 = vsel %vm1678, %v1671, %v1675
        %v1680 = vand.u32 2147483647, %v1289
        %vm1681 = vcmp.eq.f32.partialorder %v1680, 8.507059e+37
        %v1682 = vand.u32 %v1289, 2147483648
        %v1683 = vor.u32 1.1754944e-38, %v1682
        %v1684 = vsel %vm1681, %v1683, %v1679
        %v1685 = vmul.f32 1.0, %v1684
        %v1686 = vrcp.pop %v1290
        %v1687 = vmul.f32 %v1290, %v1686
        %v1688 = vsub.f32 1.0, %v1687
        %v1689 = vmul.f32 %v1686, %v1688
        %v1690 = vadd.f32 %v1686, %v1689
        %vm1691 = vweird.f32 %v1290
        %vm1692 = vweird.f32 %v1686
        %vm1693 = vmor %vm1691, %vm1692
        %v1694 = vsel %vm1693, %v1686, %v1690
        %v1695 = vand.u32 2147483647, %v1290
        %vm1696 = vcmp.eq.f32.partialorder %v1695, 8.507059e+37
        %v1697 = vand.u32 %v1290, 2147483648
        %v1698 = vor.u32 1.1754944e-38, %v1697
        %v1699 = vsel %vm1696, %v1698, %v1694
        %v1700 = vmul.f32 1.0, %v1699
        %v1701 = vrcp.pop %v1291
        %v1702 = vmul.f32 %v1291, %v1701
        %v1703 = vsub.f32 1.0, %v1702
        %v1704 = vmul.f32 %v1701, %v1703
        %v1705 = vadd.f32 %v1701, %v1704
        %vm1706 = vweird.f32 %v1291
        %vm1707 = vweird.f32 %v1701
        %vm1708 = vmor %vm1706, %vm1707
        %v1709 = vsel %vm1708, %v1701, %v1705
        %v1710 = vand.u32 2147483647, %v1291
        %vm1711 = vcmp.eq.f32.partialorder %v1710, 8.507059e+37
        %v1712 = vand.u32 %v1291, 2147483648
        %v1713 = vor.u32 1.1754944e-38, %v1712
        %v1714 = vsel %vm1711, %v1713, %v1709
        %v1715 = vmul.f32 1.0, %v1714
        %v1716 = vrcp.pop %v1292
        %v1717 = vmul.f32 %v1292, %v1716
        %v1718 = vsub.f32 1.0, %v1717
        %v1719 = vmul.f32 %v1716, %v1718
        %v1720 = vadd.f32 %v1716, %v1719
        %vm1721 = vweird.f32 %v1292
        %vm1722 = vweird.f32 %v1716
        %vm1723 = vmor %vm1721, %vm1722
        %v1724 = vsel %vm1723, %v1716, %v1720
        %v1725 = vand.u32 2147483647, %v1292
        %vm1726 = vcmp.eq.f32.partialorder %v1725, 8.507059e+37
        %v1727 = vand.u32 %v1292, 2147483648
        %v1728 = vor.u32 1.1754944e-38, %v1727
        %v1729 = vsel %vm1726, %v1728, %v1724
        %v1730 = vmul.f32 1.0, %v1729
        %v1731 = vrcp.pop %v1293
        %v1732 = vmul.f32 %v1293, %v1731
        %v1733 = vsub.f32 1.0, %v1732
        %v1734 = vmul.f32 %v1731, %v1733
        %v1735 = vadd.f32 %v1731, %v1734
        %vm1736 = vweird.f32 %v1293
        %vm1737 = vweird.f32 %v1731
        %vm1738 = vmor %vm1736, %vm1737
        %v1739 = vsel %vm1738, %v1731, %v1735
        %v1740 = vand.u32 2147483647, %v1293
        %vm1741 = vcmp.eq.f32.partialorder %v1740, 8.507059e+37
        %v1742 = vand.u32 %v1293, 2147483648
        %v1743 = vor.u32 1.1754944e-38, %v1742
        %v1744 = vsel %vm1741, %v1743, %v1739
        %v1745 = vmul.f32 1.0, %v1744
        %v1746 = vrcp.pop %v1294
        %v1747 = vmul.f32 %v1294, %v1746
        %v1748 = vsub.f32 1.0, %v1747
        %v1749 = vmul.f32 %v1746, %v1748
        %v1750 = vadd.f32 %v1746, %v1749
        %vm1751 = vweird.f32 %v1294
        %vm1752 = vweird.f32 %v1746
        %vm1753 = vmor %vm1751, %vm1752
        %v1754 = vsel %vm1753, %v1746, %v1750
        %v1755 = vand.u32 2147483647, %v1294
        %vm1756 = vcmp.eq.f32.partialorder %v1755, 8.507059e+37
        %v1757 = vand.u32 %v1294, 2147483648
        %v1758 = vor.u32 1.1754944e-38, %v1757
        %v1759 = vsel %vm1756, %v1758, %v1754
        %v1760 = vmul.f32 1.0, %v1759
        %v1761 = vrcp.pop %v1295
        %v1762 = vmul.f32 %v1295, %v1761
        %v1763 = vsub.f32 1.0, %v1762
        %v1764 = vmul.f32 %v1761, %v1763
        %v1765 = vadd.f32 %v1761, %v1764
        %vm1766 = vweird.f32 %v1295
        %vm1767 = vweird.f32 %v1761
        %vm1768 = vmor %vm1766, %vm1767
        %v1769 = vsel %vm1768, %v1761, %v1765
        %v1770 = vand.u32 2147483647, %v1295
        %vm1771 = vcmp.eq.f32.partialorder %v1770, 8.507059e+37
        %v1772 = vand.u32 %v1295, 2147483648
        %v1773 = vor.u32 1.1754944e-38, %v1772
        %v1774 = vsel %vm1771, %v1773, %v1769
        %v1775 = vmul.f32 1.0, %v1774
        %1777 = vset.pattern.permute.xlu0 0
        %1778 = vperm.xlu0 %1777, %v648
        %v1779 = vpop.permute.xlu0 %1778
        %1782 = vset.pattern.permute.xlu0 0
        %1783 = vperm.xlu0 %1782, %v663
        %v1784 = vpop.permute.xlu0 %1783
        %1787 = vset.pattern.permute.xlu0 0
        %1788 = vperm.xlu0 %1787, %v678
        %v1789 = vpop.permute.xlu0 %1788
        %1792 = vset.pattern.permute.xlu0 0
        %1793 = vperm.xlu0 %1792, %v693
        %v1794 = vpop.permute.xlu0 %1793
        %v1796 = vadd.f32 %v1779, %v1310
        %v1797 = vadd.f32 %v1779, %v1325
        %v1798 = vadd.f32 %v1779, %v1340
        %v1799 = vadd.f32 %v1779, %v1355
        %v1800 = vadd.f32 %v1779, %v1370
        %v1801 = vadd.f32 %v1779, %v1385
        %v1802 = vadd.f32 %v1779, %v1400
        %v1803 = vadd.f32 %v1779, %v1415
        %v1804 = vadd.f32 %v1779, %v1430
        %v1805 = vadd.f32 %v1779, %v1445
        %v1806 = vadd.f32 %v1779, %v1460
        %v1807 = vadd.f32 %v1779, %v1475
        %v1808 = vadd.f32 %v1779, %v1490
        %v1809 = vadd.f32 %v1779, %v1505
        %v1810 = vadd.f32 %v1779, %v1520
        %v1811 = vadd.f32 %v1779, %v1535
        %v1812 = vadd.f32 %v1779, %v1550
        %v1813 = vadd.f32 %v1779, %v1565
        %v1814 = vadd.f32 %v1779, %v1580
        %v1815 = vadd.f32 %v1779, %v1595
        %v1816 = vadd.f32 %v1779, %v1610
        %v1817 = vadd.f32 %v1779, %v1625
        %v1818 = vadd.f32 %v1779, %v1640
        %v1819 = vadd.f32 %v1779, %v1655
        %v1820 = vadd.f32 %v1779, %v1670
        %v1821 = vadd.f32 %v1779, %v1685
        %v1822 = vadd.f32 %v1779, %v1700
        %v1823 = vadd.f32 %v1779, %v1715
        %v1824 = vadd.f32 %v1779, %v1730
        %v1825 = vadd.f32 %v1779, %v1745
        %v1826 = vadd.f32 %v1779, %v1760
        %v1827 = vadd.f32 %v1779, %v1775
        %v1828 = vadd.f32 %v1784, %v1310
        %v1829 = vadd.f32 %v1784, %v1325
        %v1830 = vadd.f32 %v1784, %v1340
        %v1831 = vadd.f32 %v1784, %v1355
        %v1832 = vadd.f32 %v1784, %v1370
        %v1833 = vadd.f32 %v1784, %v1385
        %v1834 = vadd.f32 %v1784, %v1400
        %v1835 = vadd.f32 %v1784, %v1415
        %v1836 = vadd.f32 %v1784, %v1430
        %v1837 = vadd.f32 %v1784, %v1445
        %v1838 = vadd.f32 %v1784, %v1460
        %v1839 = vadd.f32 %v1784, %v1475
        %v1840 = vadd.f32 %v1784, %v1490
        %v1841 = vadd.f32 %v1784, %v1505
        %v1842 = vadd.f32 %v1784, %v1520
        %v1843 = vadd.f32 %v1784, %v1535
        %v1844 = vadd.f32 %v1784, %v1550
        %v1845 = vadd.f32 %v1784, %v1565
        %v1846 = vadd.f32 %v1784, %v1580
        %v1847 = vadd.f32 %v1784, %v1595
        %v1848 = vadd.f32 %v1784, %v1610
        %v1849 = vadd.f32 %v1784, %v1625
        %v1850 = vadd.f32 %v1784, %v1640
        %v1851 = vadd.f32 %v1784, %v1655
        %v1852 = vadd.f32 %v1784, %v1670
        %v1853 = vadd.f32 %v1784, %v1685
        %v1854 = vadd.f32 %v1784, %v1700
        %v1855 = vadd.f32 %v1784, %v1715
        %v1856 = vadd.f32 %v1784, %v1730
        %v1857 = vadd.f32 %v1784, %v1745
        %v1858 = vadd.f32 %v1784, %v1760
        %v1859 = vadd.f32 %v1784, %v1775
        %v1860 = vadd.f32 %v1789, %v1310
        %v1861 = vadd.f32 %v1789, %v1325
        %v1862 = vadd.f32 %v1789, %v1340
        %v1863 = vadd.f32 %v1789, %v1355
        %v1864 = vadd.f32 %v1789, %v1370
        %v1865 = vadd.f32 %v1789, %v1385
        %v1866 = vadd.f32 %v1789, %v1400
        %v1867 = vadd.f32 %v1789, %v1415
        %v1868 = vadd.f32 %v1789, %v1430
        %v1869 = vadd.f32 %v1789, %v1445
        %v1870 = vadd.f32 %v1789, %v1460
        %v1871 = vadd.f32 %v1789, %v1475
        %v1872 = vadd.f32 %v1789, %v1490
        %v1873 = vadd.f32 %v1789, %v1505
        %v1874 = vadd.f32 %v1789, %v1520
        %v1875 = vadd.f32 %v1789, %v1535
        %v1876 = vadd.f32 %v1789, %v1550
        %v1877 = vadd.f32 %v1789, %v1565
        %v1878 = vadd.f32 %v1789, %v1580
        %v1879 = vadd.f32 %v1789, %v1595
        %v1880 = vadd.f32 %v1789, %v1610
        %v1881 = vadd.f32 %v1789, %v1625
        %v1882 = vadd.f32 %v1789, %v1640
        %v1883 = vadd.f32 %v1789, %v1655
        %v1884 = vadd.f32 %v1789, %v1670
        %v1885 = vadd.f32 %v1789, %v1685
        %v1886 = vadd.f32 %v1789, %v1700
        %v1887 = vadd.f32 %v1789, %v1715
        %v1888 = vadd.f32 %v1789, %v1730
        %v1889 = vadd.f32 %v1789, %v1745
        %v1890 = vadd.f32 %v1789, %v1760
        %v1891 = vadd.f32 %v1789, %v1775
        %v1892 = vadd.f32 %v1794, %v1310
        %v1893 = vadd.f32 %v1794, %v1325
        %v1894 = vadd.f32 %v1794, %v1340
        %v1895 = vadd.f32 %v1794, %v1355
        %v1896 = vadd.f32 %v1794, %v1370
        %v1897 = vadd.f32 %v1794, %v1385
        %v1898 = vadd.f32 %v1794, %v1400
        %v1899 = vadd.f32 %v1794, %v1415
        %v1900 = vadd.f32 %v1794, %v1430
        %v1901 = vadd.f32 %v1794, %v1445
        %v1902 = vadd.f32 %v1794, %v1460
        %v1903 = vadd.f32 %v1794, %v1475
        %v1904 = vadd.f32 %v1794, %v1490
        %v1905 = vadd.f32 %v1794, %v1505
        %v1906 = vadd.f32 %v1794, %v1520
        %v1907 = vadd.f32 %v1794, %v1535
        %v1908 = vadd.f32 %v1794, %v1550
        %v1909 = vadd.f32 %v1794, %v1565
        %v1910 = vadd.f32 %v1794, %v1580
        %v1911 = vadd.f32 %v1794, %v1595
        %v1912 = vadd.f32 %v1794, %v1610
        %v1913 = vadd.f32 %v1794, %v1625
        %v1914 = vadd.f32 %v1794, %v1640
        %v1915 = vadd.f32 %v1794, %v1655
        %v1916 = vadd.f32 %v1794, %v1670
        %v1917 = vadd.f32 %v1794, %v1685
        %v1918 = vadd.f32 %v1794, %v1700
        %v1919 = vadd.f32 %v1794, %v1715
        %v1920 = vadd.f32 %v1794, %v1730
        %v1921 = vadd.f32 %v1794, %v1745
        %v1922 = vadd.f32 %v1794, %v1760
        %v1923 = vadd.f32 %v1794, %v1775
        %v1924 = vmul.f32 %v300, %v1796
        %v1925 = vmul.f32 %v301, %v1797
        %v1926 = vmul.f32 %v302, %v1798
        %v1927 = vmul.f32 %v303, %v1799
        %v1928 = vmul.f32 %v304, %v1800
        %v1929 = vmul.f32 %v305, %v1801
        %v1930 = vmul.f32 %v306, %v1802
        %v1931 = vmul.f32 %v307, %v1803
        %v1932 = vmul.f32 %v308, %v1804
        %v1933 = vmul.f32 %v309, %v1805
        %v1934 = vmul.f32 %v310, %v1806
        %v1935 = vmul.f32 %v311, %v1807
        %v1936 = vmul.f32 %v312, %v1808
        %v1937 = vmul.f32 %v313, %v1809
        %v1938 = vmul.f32 %v314, %v1810
        %v1939 = vmul.f32 %v315, %v1811
        %v1940 = vmul.f32 %v316, %v1812
        %v1941 = vmul.f32 %v317, %v1813
        %v1942 = vmul.f32 %v318, %v1814
        %v1943 = vmul.f32 %v319, %v1815
        %v1944 = vmul.f32 %v320, %v1816
        %v1945 = vmul.f32 %v321, %v1817
        %v1946 = vmul.f32 %v322, %v1818
        %v1947 = vmul.f32 %v323, %v1819
        %v1948 = vmul.f32 %v324, %v1820
        %v1949 = vmul.f32 %v325, %v1821
        %v1950 = vmul.f32 %v326, %v1822
        %v1951 = vmul.f32 %v327, %v1823
        %v1952 = vmul.f32 %v328, %v1824
        %v1953 = vmul.f32 %v329, %v1825
        %v1954 = vmul.f32 %v330, %v1826
        %v1955 = vmul.f32 %v331, %v1827
        %v1956 = vmul.f32 %v332, %v1828
        %v1957 = vmul.f32 %v333, %v1829
        %v1958 = vmul.f32 %v334, %v1830
        %v1959 = vmul.f32 %v335, %v1831
        %v1960 = vmul.f32 %v336, %v1832
        %v1961 = vmul.f32 %v337, %v1833
        %v1962 = vmul.f32 %v338, %v1834
        %v1963 = vmul.f32 %v339, %v1835
        %v1964 = vmul.f32 %v340, %v1836
        %v1965 = vmul.f32 %v341, %v1837
        %v1966 = vmul.f32 %v342, %v1838
        %v1967 = vmul.f32 %v343, %v1839
        %v1968 = vmul.f32 %v344, %v1840
        %v1969 = vmul.f32 %v345, %v1841
        %v1970 = vmul.f32 %v346, %v1842
        %v1971 = vmul.f32 %v347, %v1843
        %v1972 = vmul.f32 %v348, %v1844
        %v1973 = vmul.f32 %v349, %v1845
        %v1974 = vmul.f32 %v350, %v1846
        %v1975 = vmul.f32 %v351, %v1847
        %v1976 = vmul.f32 %v352, %v1848
        %v1977 = vmul.f32 %v353, %v1849
        %v1978 = vmul.f32 %v354, %v1850
        %v1979 = vmul.f32 %v355, %v1851
        %v1980 = vmul.f32 %v356, %v1852
        %v1981 = vmul.f32 %v357, %v1853
        %v1982 = vmul.f32 %v358, %v1854
        %v1983 = vmul.f32 %v359, %v1855
        %v1984 = vmul.f32 %v360, %v1856
        %v1985 = vmul.f32 %v361, %v1857
        %v1986 = vmul.f32 %v362, %v1858
        %v1987 = vmul.f32 %v363, %v1859
        %v1988 = vmul.f32 %v364, %v1860
        %v1989 = vmul.f32 %v365, %v1861
        %v1990 = vmul.f32 %v366, %v1862
        %v1991 = vmul.f32 %v367, %v1863
        %v1992 = vmul.f32 %v368, %v1864
        %v1993 = vmul.f32 %v369, %v1865
        %v1994 = vmul.f32 %v370, %v1866
        %v1995 = vmul.f32 %v371, %v1867
        %v1996 = vmul.f32 %v372, %v1868
        %v1997 = vmul.f32 %v373, %v1869
        %v1998 = vmul.f32 %v374, %v1870
        %v1999 = vmul.f32 %v375, %v1871
        %v2000 = vmul.f32 %v376, %v1872
        %v2001 = vmul.f32 %v377, %v1873
        %v2002 = vmul.f32 %v378, %v1874
        %v2003 = vmul.f32 %v379, %v1875
        %v2004 = vmul.f32 %v380, %v1876
        %v2005 = vmul.f32 %v381, %v1877
        %v2006 = vmul.f32 %v382, %v1878
        %v2007 = vmul.f32 %v383, %v1879
        %v2008 = vmul.f32 %v384, %v1880
        %v2009 = vmul.f32 %v385, %v1881
        %v2010 = vmul.f32 %v386, %v1882
        %v2011 = vmul.f32 %v387, %v1883
        %v2012 = vmul.f32 %v388, %v1884
        %v2013 = vmul.f32 %v389, %v1885
        %v2014 = vmul.f32 %v390, %v1886
        %v2015 = vmul.f32 %v391, %v1887
        %v2016 = vmul.f32 %v392, %v1888
        %v2017 = vmul.f32 %v393, %v1889
        %v2018 = vmul.f32 %v394, %v1890
        %v2019 = vmul.f32 %v395, %v1891
        %v2020 = vmul.f32 %v396, %v1892
        %v2021 = vmul.f32 %v397, %v1893
        %v2022 = vmul.f32 %v398, %v1894
        %v2023 = vmul.f32 %v399, %v1895
        %v2024 = vmul.f32 %v400, %v1896
        %v2025 = vmul.f32 %v401, %v1897
        %v2026 = vmul.f32 %v402, %v1898
        %v2027 = vmul.f32 %v403, %v1899
        %v2028 = vmul.f32 %v404, %v1900
        %v2029 = vmul.f32 %v405, %v1901
        %v2030 = vmul.f32 %v406, %v1902
        %v2031 = vmul.f32 %v407, %v1903
        %v2032 = vmul.f32 %v408, %v1904
        %v2033 = vmul.f32 %v409, %v1905
        %v2034 = vmul.f32 %v410, %v1906
        %v2035 = vmul.f32 %v411, %v1907
        %v2036 = vmul.f32 %v412, %v1908
        %v2037 = vmul.f32 %v413, %v1909
        %v2038 = vmul.f32 %v414, %v1910
        %v2039 = vmul.f32 %v415, %v1911
        %v2040 = vmul.f32 %v416, %v1912
        %v2041 = vmul.f32 %v417, %v1913
        %v2042 = vmul.f32 %v418, %v1914
        %v2043 = vmul.f32 %v419, %v1915
        %v2044 = vmul.f32 %v420, %v1916
        %v2045 = vmul.f32 %v421, %v1917
        %v2046 = vmul.f32 %v422, %v1918
        %v2047 = vmul.f32 %v423, %v1919
        %v2048 = vmul.f32 %v424, %v1920
        %v2049 = vmul.f32 %v425, %v1921
        %v2050 = vmul.f32 %v426, %v1922
        %v2051 = vmul.f32 %v427, %v1923
        %2052 = vst [vmem:[%s299] sm:$0xff] %v1924
        %2053 = vst [vmem:[%s299 + $0x8] sm:$0xff] %v1925
        %2054 = vst [vmem:[%s299 + $0x10] sm:$0xff] %v1926
        %2055 = vst [vmem:[%s299 + $0x18] sm:$0xff] %v1927
        %2056 = vst [vmem:[%s299 + $0x20] sm:$0xff] %v1928
        %2057 = vst [vmem:[%s299 + $0x28] sm:$0xff] %v1929
        %2058 = vst [vmem:[%s299 + $0x30] sm:$0xff] %v1930
        %2059 = vst [vmem:[%s299 + $0x38] sm:$0xff] %v1931
        %2060 = vst [vmem:[%s299 + $0x40] sm:$0xff] %v1932
        %2061 = vst [vmem:[%s299 + $0x48] sm:$0xff] %v1933
        %2062 = vst [vmem:[%s299 + $0x50] sm:$0xff] %v1934
        %2063 = vst [vmem:[%s299 + $0x58] sm:$0xff] %v1935
        %2064 = vst [vmem:[%s299 + $0x60] sm:$0xff] %v1936
        %2065 = vst [vmem:[%s299 + $0x68] sm:$0xff] %v1937
        %2066 = vst [vmem:[%s299 + $0x70] sm:$0xff] %v1938
        %2067 = vst [vmem:[%s299 + $0x78] sm:$0xff] %v1939
        %2068 = vst [vmem:[%s299 + $0x80] sm:$0xff] %v1940
        %2069 = vst [vmem:[%s299 + $0x88] sm:$0xff] %v1941
        %2070 = vst [vmem:[%s299 + $0x90] sm:$0xff] %v1942
        %2071 = vst [vmem:[%s299 + $0x98] sm:$0xff] %v1943
        %2072 = vst [vmem:[%s299 + $0xa0] sm:$0xff] %v1944
        %2073 = vst [vmem:[%s299 + $0xa8] sm:$0xff] %v1945
        %2074 = vst [vmem:[%s299 + $0xb0] sm:$0xff] %v1946
        %2075 = vst [vmem:[%s299 + $0xb8] sm:$0xff] %v1947
        %2076 = vst [vmem:[%s299 + $0xc0] sm:$0xff] %v1948
        %2077 = vst [vmem:[%s299 + $0xc8] sm:$0xff] %v1949
        %2078 = vst [vmem:[%s299 + $0xd0] sm:$0xff] %v1950
        %2079 = vst [vmem:[%s299 + $0xd8] sm:$0xff] %v1951
        %2080 = vst [vmem:[%s299 + $0xe0] sm:$0xff] %v1952
        %2081 = vst [vmem:[%s299 + $0xe8] sm:$0xff] %v1953
        %2082 = vst [vmem:[%s299 + $0xf0] sm:$0xff] %v1954
        %2083 = vst [vmem:[%s299 + $0xf8] sm:$0xff] %v1955
        %2084 = vst [vmem:[%s299 + $0x100] sm:$0xff] %v1956
        %2085 = vst [vmem:[%s299 + $0x108] sm:$0xff] %v1957
        %2086 = vst [vmem:[%s299 + $0x110] sm:$0xff] %v1958
        %2087 = vst [vmem:[%s299 + $0x118] sm:$0xff] %v1959
        %2088 = vst [vmem:[%s299 + $0x120] sm:$0xff] %v1960
        %2089 = vst [vmem:[%s299 + $0x128] sm:$0xff] %v1961
        %2090 = vst [vmem:[%s299 + $0x130] sm:$0xff] %v1962
        %2091 = vst [vmem:[%s299 + $0x138] sm:$0xff] %v1963
        %2092 = vst [vmem:[%s299 + $0x140] sm:$0xff] %v1964
        %2093 = vst [vmem:[%s299 + $0x148] sm:$0xff] %v1965
        %2094 = vst [vmem:[%s299 + $0x150] sm:$0xff] %v1966
        %2095 = vst [vmem:[%s299 + $0x158] sm:$0xff] %v1967
        %2096 = vst [vmem:[%s299 + $0x160] sm:$0xff] %v1968
        %2097 = vst [vmem:[%s299 + $0x168] sm:$0xff] %v1969
        %2098 = vst [vmem:[%s299 + $0x170] sm:$0xff] %v1970
        %2099 = vst [vmem:[%s299 + $0x178] sm:$0xff] %v1971
        %2100 = vst [vmem:[%s299 + $0x180] sm:$0xff] %v1972
        %2101 = vst [vmem:[%s299 + $0x188] sm:$0xff] %v1973
        %2102 = vst [vmem:[%s299 + $0x190] sm:$0xff] %v1974
        %2103 = vst [vmem:[%s299 + $0x198] sm:$0xff] %v1975
        %2104 = vst [vmem:[%s299 + $0x1a0] sm:$0xff] %v1976
        %2105 = vst [vmem:[%s299 + $0x1a8] sm:$0xff] %v1977
        %2106 = vst [vmem:[%s299 + $0x1b0] sm:$0xff] %v1978
        %2107 = vst [vmem:[%s299 + $0x1b8] sm:$0xff] %v1979
        %2108 = vst [vmem:[%s299 + $0x1c0] sm:$0xff] %v1980
        %2109 = vst [vmem:[%s299 + $0x1c8] sm:$0xff] %v1981
        %2110 = vst [vmem:[%s299 + $0x1d0] sm:$0xff] %v1982
        %2111 = vst [vmem:[%s299 + $0x1d8] sm:$0xff] %v1983
        %2112 = vst [vmem:[%s299 + $0x1e0] sm:$0xff] %v1984
        %2113 = vst [vmem:[%s299 + $0x1e8] sm:$0xff] %v1985
        %2114 = vst [vmem:[%s299 + $0x1f0] sm:$0xff] %v1986
        %2115 = vst [vmem:[%s299 + $0x1f8] sm:$0xff] %v1987
        %2116 = vst [vmem:[%s299 + $0x200] sm:$0xff] %v1988
        %2117 = vst [vmem:[%s299 + $0x208] sm:$0xff] %v1989
        %2118 = vst [vmem:[%s299 + $0x210] sm:$0xff] %v1990
        %2119 = vst [vmem:[%s299 + $0x218] sm:$0xff] %v1991
        %2120 = vst [vmem:[%s299 + $0x220] sm:$0xff] %v1992
        %2121 = vst [vmem:[%s299 + $0x228] sm:$0xff] %v1993
        %2122 = vst [vmem:[%s299 + $0x230] sm:$0xff] %v1994
        %2123 = vst [vmem:[%s299 + $0x238] sm:$0xff] %v1995
        %2124 = vst [vmem:[%s299 + $0x240] sm:$0xff] %v1996
        %2125 = vst [vmem:[%s299 + $0x248] sm:$0xff] %v1997
        %2126 = vst [vmem:[%s299 + $0x250] sm:$0xff] %v1998
        %2127 = vst [vmem:[%s299 + $0x258] sm:$0xff] %v1999
        %2128 = vst [vmem:[%s299 + $0x260] sm:$0xff] %v2000
        %2129 = vst [vmem:[%s299 + $0x268] sm:$0xff] %v2001
        %2130 = vst [vmem:[%s299 + $0x270] sm:$0xff] %v2002
        %2131 = vst [vmem:[%s299 + $0x278] sm:$0xff] %v2003
        %2132 = vst [vmem:[%s299 + $0x280] sm:$0xff] %v2004
        %2133 = vst [vmem:[%s299 + $0x288] sm:$0xff] %v2005
        %2134 = vst [vmem:[%s299 + $0x290] sm:$0xff] %v2006
        %2135 = vst [vmem:[%s299 + $0x298] sm:$0xff] %v2007
        %2136 = vst [vmem:[%s299 + $0x2a0] sm:$0xff] %v2008
        %2137 = vst [vmem:[%s299 + $0x2a8] sm:$0xff] %v2009
        %2138 = vst [vmem:[%s299 + $0x2b0] sm:$0xff] %v2010
        %2139 = vst [vmem:[%s299 + $0x2b8] sm:$0xff] %v2011
        %2140 = vst [vmem:[%s299 + $0x2c0] sm:$0xff] %v2012
        %2141 = vst [vmem:[%s299 + $0x2c8] sm:$0xff] %v2013
        %2142 = vst [vmem:[%s299 + $0x2d0] sm:$0xff] %v2014
        %2143 = vst [vmem:[%s299 + $0x2d8] sm:$0xff] %v2015
        %2144 = vst [vmem:[%s299 + $0x2e0] sm:$0xff] %v2016
        %2145 = vst [vmem:[%s299 + $0x2e8] sm:$0xff] %v2017
        %2146 = vst [vmem:[%s299 + $0x2f0] sm:$0xff] %v2018
        %2147 = vst [vmem:[%s299 + $0x2f8] sm:$0xff] %v2019
        %2148 = vst [vmem:[%s299 + $0x300] sm:$0xff] %v2020
        %2149 = vst [vmem:[%s299 + $0x308] sm:$0xff] %v2021
        %2150 = vst [vmem:[%s299 + $0x310] sm:$0xff] %v2022
        %2151 = vst [vmem:[%s299 + $0x318] sm:$0xff] %v2023
        %2152 = vst [vmem:[%s299 + $0x320] sm:$0xff] %v2024
        %2153 = vst [vmem:[%s299 + $0x328] sm:$0xff] %v2025
        %2154 = vst [vmem:[%s299 + $0x330] sm:$0xff] %v2026
        %2155 = vst [vmem:[%s299 + $0x338] sm:$0xff] %v2027
        %2156 = vst [vmem:[%s299 + $0x340] sm:$0xff] %v2028
        %2157 = vst [vmem:[%s299 + $0x348] sm:$0xff] %v2029
        %2158 = vst [vmem:[%s299 + $0x350] sm:$0xff] %v2030
        %2159 = vst [vmem:[%s299 + $0x358] sm:$0xff] %v2031
        %2160 = vst [vmem:[%s299 + $0x360] sm:$0xff] %v2032
        %2161 = vst [vmem:[%s299 + $0x368] sm:$0xff] %v2033
        %2162 = vst [vmem:[%s299 + $0x370] sm:$0xff] %v2034
        %2163 = vst [vmem:[%s299 + $0x378] sm:$0xff] %v2035
        %2164 = vst [vmem:[%s299 + $0x380] sm:$0xff] %v2036
        %2165 = vst [vmem:[%s299 + $0x388] sm:$0xff] %v2037
        %2166 = vst [vmem:[%s299 + $0x390] sm:$0xff] %v2038
        %2167 = vst [vmem:[%s299 + $0x398] sm:$0xff] %v2039
        %2168 = vst [vmem:[%s299 + $0x3a0] sm:$0xff] %v2040
        %2169 = vst [vmem:[%s299 + $0x3a8] sm:$0xff] %v2041
        %2170 = vst [vmem:[%s299 + $0x3b0] sm:$0xff] %v2042
        %2171 = vst [vmem:[%s299 + $0x3b8] sm:$0xff] %v2043
        %2172 = vst [vmem:[%s299 + $0x3c0] sm:$0xff] %v2044
        %2173 = vst [vmem:[%s299 + $0x3c8] sm:$0xff] %v2045
        %2174 = vst [vmem:[%s299 + $0x3d0] sm:$0xff] %v2046
        %2175 = vst [vmem:[%s299 + $0x3d8] sm:$0xff] %v2047
        %2176 = vst [vmem:[%s299 + $0x3e0] sm:$0xff] %v2048
        %2177 = vst [vmem:[%s299 + $0x3e8] sm:$0xff] %v2049
        %2178 = vst [vmem:[%s299 + $0x3f0] sm:$0xff] %v2050
        %2179 = vst [vmem:[%s299 + $0x3f8] sm:$0xff] %v2051
        %s2180 = sand.u32 %s185, 1
        %s2181 = scalar_lea.sflag [#allocation5], %s2180
        %s2182 = sand.u32 %s185, 1
        %s2183 = smul.addr %s2182, 1024
        %s2184 = scalar_lea.vmem [#allocation6], %s2183
        // Predicated region
        $region53: #{tpu_custom_call.1} parent=47 // pred_check
          %p2185 = pneg %p195
        $region54: #{tpu_custom_call.1} parent=47 // pred_check_branch
          %2187 = sbr.rel (%p2185) target = $region56
        $region55: #{tpu_custom_call.1} parent=47 // pred_region
          %2189 = vsyncadd %s2181, 0
          %s2190 = smul.addr %s25, 128
          %s2191 = smul.addr %s2190, 8
          %s2192 = scalar_lea.hbm %s7, %s2191
          %s2193 = sshll.u32 %s2184, 4
          %s2194 = int_to_ptr.vmem [resolvable:$true] %s2193
          %s2195 = sshll.u32 %s2192, 4
          %s2196 = int_to_ptr.hbm [resolvable:$true] %s2195
          %2201 = dma.vmem_to_hbm [thread:$0]  %s2194, 16384, %s2196, %s2181, 4096, 4096, 256
        $region56: #{tpu_custom_call.1} parent=47 // pred_fallthru
          _
      $region48: #{tpu_custom_call.1} parent=5 // pred_fallthru
        _
      %p2202 = scmp.le.s32.totalorder 2, %s20
      // Predicated region
      $region57: #{tpu_custom_call.1} parent=5 // pred_check
        %p2203 = pneg %p2202
      $region58: #{tpu_custom_call.1} parent=5 // pred_check_branch
        %2205 = sbr.rel (%p2203) target = $region60
      $region59: #{tpu_custom_call.1} parent=5 // pred_region
        %s2206 = ssub.s32 %s20, 2
        // Predicated region
        $region61: #{tpu_custom_call.1} parent=59 // pred_check
          %p2207 = pneg %p201
        $region62: #{tpu_custom_call.1} parent=59 // pred_check_branch
          %2209 = sbr.rel (%p2207) target = $region64
        $region63: #{tpu_custom_call.1} parent=59 // pred_region
          %s2210 = sand.u32 %s186, 1
          %s2211 = scalar_lea.sflag [#allocation5], %s2210
          %s2212 = sand.u32 %s186, 1
          %s2213 = smul.addr %s2212, 1024
          %s2214 = scalar_lea.vmem [#allocation6], %s2213
          %2216 = dma.done %s2211, 16384
        $region64: #{tpu_custom_call.1} parent=59 // pred_fallthru
          _
      $region60: #{tpu_custom_call.1} parent=5 // pred_fallthru
        _
    $region6: #{tpu_custom_call.1} parent=1 // loop_footer
      %s24 = sadd.s32 1, %s20
    $region7: #{tpu_custom_call.1} parent=1 // loop_footer_branch
      %19 = sbr.rel target = $region3
    $region8: #{tpu_custom_call.1} parent=1 // loop_exit
      _
    %2217 = vsyncpa [#allocation4], 1
    %s2218 = scalar_lea.sflag [#allocation4], 1
    %2219 = vsyncpa %s2218, 1
    %2220 = vsyncpa [#allocation5], 1
    %s2221 = scalar_lea.sflag [#allocation5], 1
    %2222 = vsyncpa %s2221, 1

</llo_original>
